<compile_context>
chip_gen: v7x
topology: tpu7x:2x2x1
jax: 0.10.0
libtpu: 0.0.40
codegen_flags: <defaults>
</compile_context>

<pallas_src>
import functools

import jax
import jax.numpy as jnp
from jax import lax
from jax.experimental import pallas as pl
from jax.experimental.pallas import tpu as pltpu


def _lstm_kernel(num_layers, hidden_size, seq_len, batch,
                 x_ref, len_ref, *rest):
    """rest = [w_ih_t, w_hh_t, bias] * num_layers + [w_out_pad, b_out_pad, out_ref]."""
    H = hidden_size
    T = seq_len
    B = batch

    layer_refs = rest[:3 * num_layers]
    w_out_ref = rest[3 * num_layers]       # (H, 128)  (columns >= 4 are zero)
    b_out_ref = rest[3 * num_layers + 1]   # (1, 128)
    out_ref = rest[3 * num_layers + 2]     # (L*B, 128)

    lengths = len_ref[...]                 # (B, 1) int32

    # Column masks for the g-gate block (gate order i, f, g, o).
    # Weights/bias get their g-columns scaled by 2 so one full-width sigmoid
    # computes every gate; the fixup 2*sigmoid(2x) - 1 == tanh(x) is exact.
    col = lax.broadcasted_iota(jnp.int32, (1, 4 * H), 1)
    is_g = (col >= 2 * H) & (col < 3 * H)
    g_scale = jnp.where(is_g, 2.0, 1.0).astype(jnp.float32)    # (1, 4H)
    act_shift = jnp.where(is_g, -1.0, 0.0).astype(jnp.float32)  # (1, 4H)

    x_seq = x_ref[...]                     # (T*B, D_in) — whole sequence, time-major rows

    hn_rows = []
    for l in range(num_layers):
        w_ih_t = layer_refs[3 * l][...] * g_scale       # (D_in, 4H), g-cols pre-scaled
        w_hh_t = layer_refs[3 * l + 1][...] * g_scale   # (H, 4H)
        bias = layer_refs[3 * l + 2][...] * g_scale     # (1, 4H)  (= b_ih + b_hh)

        # One big, well-shaped MXU matmul for the whole sequence's input projection.
        xproj = jnp.dot(x_seq, w_ih_t,
                        preferred_element_type=jnp.float32) + bias    # (T*B, 4H)

        h = jnp.zeros((B, H), jnp.float32)
        c = jnp.zeros((B, H), jnp.float32)
        outs = []
        for t in range(T):  # fully unrolled: T is small & static
            gates = xproj[t * B:(t + 1) * B, :] + jnp.dot(
                h, w_hh_t, preferred_element_type=jnp.float32)        # (B, 4H)
            # Single full-width sigmoid, then affine fixup for the g block.
            acts = jax.nn.sigmoid(gates) * g_scale + act_shift        # (B, 4H)
            i_g = acts[:, 0 * H:1 * H]
            f_g = acts[:, 1 * H:2 * H]
            g_g = acts[:, 2 * H:3 * H]
            o_g = acts[:, 3 * H:4 * H]
            c_new = f_g * c + i_g * g_g
            h_new = o_g * jnp.tanh(c_new)
            live = lengths > t                                        # (B, 1) bool
            h = jnp.where(live, h_new, h)                             # freeze after length
            c = jnp.where(live, c_new, c)
            outs.append(h)
        x_seq = jnp.concatenate(outs, axis=0)   # (T*B, H): input sequence for next layer
        hn_rows.append(h)                       # final hidden state of this layer

    hn_flat = jnp.concatenate(hn_rows, axis=0)                        # (L*B, H)
    pred = jnp.dot(hn_flat, w_out_ref[...],
                   preferred_element_type=jnp.float32) + b_out_ref[...]
    out_ref[...] = pred                                               # lane-dense (L*B, 128) store


def simple_lstm_forward(padded, lengths, params, *, hidden_size, num_layers):
    T, B, I = padded.shape
    H = hidden_size
    OUT = 4
    LANE = 128

    # Wrapper-side layout plumbing (free in XLA): flatten time into rows,
    # pad the 4-wide head to a lane-dense 128-wide slab.
    x2d = padded.reshape(T * B, I).astype(jnp.float32)
    lengths2d = lengths.reshape(B, 1).astype(jnp.int32)
    w_out_t, b_out = params["out"]                                   # (H, 4), (1, 4)
    w_out_pad = jnp.zeros((H, LANE), jnp.float32).at[:, :OUT].set(w_out_t)
    b_out_pad = jnp.zeros((1, LANE), jnp.float32).at[:, :OUT].set(b_out)

    inputs = [x2d, lengths2d]
    in_specs = [
        pl.BlockSpec((T * B, I), lambda i: (0, 0)),
        pl.BlockSpec((B, 1), lambda i: (0, 0)),
    ]
    for l in range(num_layers):
        w_ih_t, w_hh_t, bias = params["layers"][l]
        inputs += [w_ih_t, w_hh_t, bias]
        in_specs += [
            pl.BlockSpec(w_ih_t.shape, lambda i: (0, 0)),
            pl.BlockSpec(w_hh_t.shape, lambda i: (0, 0)),
            pl.BlockSpec(bias.shape, lambda i: (0, 0)),
        ]
    inputs += [w_out_pad, b_out_pad]
    in_specs += [
        pl.BlockSpec((H, LANE), lambda i: (0, 0)),
        pl.BlockSpec((1, LANE), lambda i: (0, 0)),
    ]

    kernel = functools.partial(_lstm_kernel, num_layers, hidden_size, T, B)
    pred_pad = pl.pallas_call(
        kernel,
        out_shape=jax.ShapeDtypeStruct((num_layers * B, LANE), jnp.float32),
        grid=(1,),
        in_specs=in_specs,
        out_specs=pl.BlockSpec((num_layers * B, LANE), lambda i: (0, 0)),
        compiler_params=pltpu.CompilerParams(dimension_semantics=("arbitrary",)),
    )(*inputs)
    return pred_pad[:, :OUT].reshape(num_layers, B, OUT)


def init_params(key, input_size, hidden_size, num_layers):
    """Deterministic init mimicking PyTorch's uniform(-1/sqrt(H), 1/sqrt(H))."""
    k = 1.0 / jnp.sqrt(jnp.float32(hidden_size))
    layers = []
    for l in range(num_layers):
        d_in = input_size if l == 0 else hidden_size
        key, k1, k2, k3, k4 = jax.random.split(key, 5)
        w_ih = jax.random.uniform(k1, (4 * hidden_size, d_in), jnp.float32, -k, k)
        w_hh = jax.random.uniform(k2, (4 * hidden_size, hidden_size), jnp.float32, -k, k)
        b_ih = jax.random.uniform(k3, (4 * hidden_size,), jnp.float32, -k, k)
        b_hh = jax.random.uniform(k4, (4 * hidden_size,), jnp.float32, -k, k)
        # Store transposed weights + combined bias (kernel computes x @ W^T).
        layers.append((w_ih.T, w_hh.T, (b_ih + b_hh).reshape(1, 4 * hidden_size)))
    key, k1, k2 = jax.random.split(key, 3)
    w_out = jax.random.uniform(k1, (4, hidden_size), jnp.float32, -k, k)
    b_out = jax.random.uniform(k2, (4,), jnp.float32, -k, k)
    return {"layers": layers, "out": (w_out.T, b_out.reshape(1, 4))}


def _reference_forward(padded, lengths, params, *, hidden_size, num_layers):
    """Pure-JAX reference (standard sigmoid/tanh gates) for a sanity check."""
    T, B, I = padded.shape
    H = hidden_size
    hs = [jnp.zeros((B, H), jnp.float32) for _ in range(num_layers)]
    cs = [jnp.zeros((B, H), jnp.float32) for _ in range(num_layers)]
    for t in range(T):
        mask = (lengths > t).astype(jnp.float32)[:, None]
        x = padded[t]
        for l in range(num_layers):
            w_ih_t, w_hh_t, bias = params["layers"][l]
            gates = x @ w_ih_t + hs[l] @ w_hh_t + bias
            i = jax.nn.sigmoid(gates[:, 0 * H:1 * H])
            f = jax.nn.sigmoid(gates[:, 1 * H:2 * H])
            g = jnp.tanh(gates[:, 2 * H:3 * H])
            o = jax.nn.sigmoid(gates[:, 3 * H:4 * H])
            c_new = f * cs[l] + i * g
            h_new = o * jnp.tanh(c_new)
            hs[l] = mask * h_new + (1.0 - mask) * hs[l]
            cs[l] = mask * c_new + (1.0 - mask) * cs[l]
            x = hs[l]
    hn = jnp.stack(hs, axis=0)
    w_out_t, b_out = params["out"]
    return hn @ w_out_t + b_out


if __name__ == "__main__":
    input_size = 16
    hidden_size = 32
    num_layers = 2
    seq_len = 8
    batch = 2

    key = jax.random.PRNGKey(0)
    key, kx = jax.random.split(key)
    padded = jax.random.normal(kx, (seq_len, batch, input_size), jnp.float32)
    lengths = jnp.array([8, 5], dtype=jnp.int32)  # descending, as pack_padded_sequence expects

    params = init_params(key, input_size, hidden_size, num_layers)

    out = simple_lstm_forward(padded, lengths, params,
                              hidden_size=hidden_size, num_layers=num_layers)
    out = jax.block_until_ready(out)

    ref = _reference_forward(padded, lengths, params,
                             hidden_size=hidden_size, num_layers=num_layers)
    assert out.shape == (num_layers, batch, 4)
    assert jnp.allclose(out, ref, rtol=1e-4, atol=1e-4)

    print("KERNEL_OK")
</pallas_src>

<mosaic_0001>
module attributes {stable_mosaic.version = 11 : i64} {
  func.func @_lstm_kernel(%arg0: i32, %arg1: memref<16x16xf32, #tpu.memory_space<vmem>>, %arg2: memref<2x1xi32, #tpu.memory_space<vmem>>, %arg3: memref<16x128xf32, #tpu.memory_space<vmem>>, %arg4: memref<32x128xf32, #tpu.memory_space<vmem>>, %arg5: memref<1x128xf32, #tpu.memory_space<vmem>>, %arg6: memref<32x128xf32, #tpu.memory_space<vmem>>, %arg7: memref<32x128xf32, #tpu.memory_space<vmem>>, %arg8: memref<1x128xf32, #tpu.memory_space<vmem>>, %arg9: memref<32x128xf32, #tpu.memory_space<vmem>>, %arg10: memref<1x128xf32, #tpu.memory_space<vmem>>, %arg11: memref<4x128xf32, #tpu.memory_space<vmem>>) attributes {dimension_semantics = [#tpu.dimension_semantics<arbitrary>], iteration_bounds = array<i64: 1>, scalar_prefetch = 0 : i64, scratch_operands = 0 : i64, tpu.core_type = #tpu.core_type<tc>, window_params = [{pipeline_mode = #tpu.pipeline_mode<synchronous>, transform_indices = @transform_0, window_bounds = array<i64: 16, 16>}, {pipeline_mode = #tpu.pipeline_mode<synchronous>, transform_indices = @transform_1, window_bounds = array<i64: 2, 1>}, {pipeline_mode = #tpu.pipeline_mode<synchronous>, transform_indices = @transform_2, window_bounds = array<i64: 16, 128>}, {pipeline_mode = #tpu.pipeline_mode<synchronous>, transform_indices = @transform_3, window_bounds = array<i64: 32, 128>}, {pipeline_mode = #tpu.pipeline_mode<synchronous>, transform_indices = @transform_4, window_bounds = array<i64: 1, 128>}, {pipeline_mode = #tpu.pipeline_mode<synchronous>, transform_indices = @transform_5, window_bounds = array<i64: 32, 128>}, {pipeline_mode = #tpu.pipeline_mode<synchronous>, transform_indices = @transform_6, window_bounds = array<i64: 32, 128>}, {pipeline_mode = #tpu.pipeline_mode<synchronous>, transform_indices = @transform_7, window_bounds = array<i64: 1, 128>}, {pipeline_mode = #tpu.pipeline_mode<synchronous>, transform_indices = @transform_8, window_bounds = array<i64: 32, 128>}, {pipeline_mode = #tpu.pipeline_mode<synchronous>, transform_indices = @transform_9, window_bounds = array<i64: 1, 128>}, {pipeline_mode = #tpu.pipeline_mode<synchronous>, transform_indices = @transform_10, window_bounds = array<i64: 4, 128>}]} {
    %c0 = arith.constant 0 : index
    %c0_0 = arith.constant 0 : index
    %0 = vector.load %arg2[%c0, %c0_0] : memref<2x1xi32, #tpu.memory_space<vmem>>, vector<2x1xi32>
    %1 = tpu.iota {dimensions = array<i32: 1>} : vector<1x128xi32>
    %c64_i32 = arith.constant 64 : i32
    %2 = vector.broadcast %c64_i32 : i32 to vector<1x128xi32>
    %3 = arith.cmpi sge, %1, %2 : vector<1x128xi32>
    %c96_i32 = arith.constant 96 : i32
    %4 = vector.broadcast %c96_i32 : i32 to vector<1x128xi32>
    %5 = arith.cmpi slt, %1, %4 : vector<1x128xi32>
    %6 = arith.andi %3, %5 : vector<1x128xi1>
    %cst = arith.constant 2.000000e+00 : f32
    %cst_1 = arith.constant 1.000000e+00 : f32
    %7 = vector.broadcast %cst : f32 to vector<1x128xf32>
    %8 = vector.broadcast %cst_1 : f32 to vector<1x128xf32>
    %9 = arith.select %6, %7, %8 : vector<1x128xi1>, vector<1x128xf32>
    %cst_2 = arith.constant -1.000000e+00 : f32
    %cst_3 = arith.constant 0.000000e+00 : f32
    %10 = vector.broadcast %cst_2 : f32 to vector<1x128xf32>
    %11 = vector.broadcast %cst_3 : f32 to vector<1x128xf32>
    %12 = arith.select %6, %10, %11 : vector<1x128xi1>, vector<1x128xf32>
    %c0_4 = arith.constant 0 : index
    %c0_5 = arith.constant 0 : index
    %13 = vector.load %arg1[%c0_4, %c0_5] : memref<16x16xf32, #tpu.memory_space<vmem>>, vector<16x16xf32>
    %c0_6 = arith.constant 0 : index
    %c0_7 = arith.constant 0 : index
    %14 = vector.load %arg3[%c0_6, %c0_7] : memref<16x128xf32, #tpu.memory_space<vmem>>, vector<16x128xf32>
    %15 = vector.broadcast %9 : vector<1x128xf32> to vector<16x128xf32>
    %16 = arith.mulf %14, %15 : vector<16x128xf32>
    %c0_8 = arith.constant 0 : index
    %c0_9 = arith.constant 0 : index
    %17 = vector.load %arg4[%c0_8, %c0_9] : memref<32x128xf32, #tpu.memory_space<vmem>>, vector<32x128xf32>
    %18 = vector.broadcast %9 : vector<1x128xf32> to vector<32x128xf32>
    %19 = arith.mulf %17, %18 : vector<32x128xf32>
    %c0_10 = arith.constant 0 : index
    %c0_11 = arith.constant 0 : index
    %20 = vector.load %arg5[%c0_10, %c0_11] : memref<1x128xf32, #tpu.memory_space<vmem>>, vector<1x128xf32>
    %21 = arith.mulf %20, %9 : vector<1x128xf32>
    %cst_12 = arith.constant dense<0.000000e+00> : vector<16x128xf32>
    %22 = tpu.matmul %13, %16, %cst_12 {dimension_numbers = #tpu.dot_dimension_numbers<[1], [0], [0], [1], [0, 0, 1, 1], [], []>} : vector<16x16xf32>, vector<16x128xf32>, vector<16x128xf32> -> vector<16x128xf32>
    %23 = vector.broadcast %21 : vector<1x128xf32> to vector<16x128xf32>
    %24 = arith.addf %22, %23 : vector<16x128xf32>
    %cst_13 = arith.constant 0.000000e+00 : f32
    %25 = vector.broadcast %cst_13 : f32 to vector<2x32xf32>
    %cst_14 = arith.constant 0.000000e+00 : f32
    %26 = vector.broadcast %cst_14 : f32 to vector<2x32xf32>
    %27 = vector.extract_strided_slice %24 {offsets = [0, 0], sizes = [2, 128], strides = [1, 1]} : vector<16x128xf32> to vector<2x128xf32>
    %cst_15 = arith.constant dense<0.000000e+00> : vector<2x128xf32>
    %28 = tpu.matmul %25, %19, %cst_15 {dimension_numbers = #tpu.dot_dimension_numbers<[1], [0], [0], [1], [0, 0, 1, 1], [], []>} : vector<2x32xf32>, vector<32x128xf32>, vector<2x128xf32> -> vector<2x128xf32>
    %29 = arith.addf %27, %28 : vector<2x128xf32>
    %30 = arith.negf %29 : vector<2x128xf32>
    %31 = math.exp %30 : vector<2x128xf32>
    %cst_16 = arith.constant 1.000000e+00 : f32
    %32 = vector.broadcast %cst_16 : f32 to vector<2x128xf32>
    %33 = arith.addf %32, %31 : vector<2x128xf32>
    %34 = arith.divf %32, %33 : vector<2x128xf32>
    %35 = vector.broadcast %9 : vector<1x128xf32> to vector<2x128xf32>
    %36 = arith.mulf %34, %35 : vector<2x128xf32>
    %37 = vector.broadcast %12 : vector<1x128xf32> to vector<2x128xf32>
    %38 = arith.addf %36, %37 : vector<2x128xf32>
    %39 = vector.extract_strided_slice %38 {offsets = [0, 0], sizes = [2, 32], strides = [1, 1]} : vector<2x128xf32> to vector<2x32xf32>
    %40 = vector.extract_strided_slice %38 {offsets = [0, 32], sizes = [2, 32], strides = [1, 1]} : vector<2x128xf32> to vector<2x32xf32>
    %41 = vector.extract_strided_slice %38 {offsets = [0, 64], sizes = [2, 32], strides = [1, 1]} : vector<2x128xf32> to vector<2x32xf32>
    %42 = vector.extract_strided_slice %38 {offsets = [0, 96], sizes = [2, 32], strides = [1, 1]} : vector<2x128xf32> to vector<2x32xf32>
    %43 = arith.mulf %40, %26 : vector<2x32xf32>
    %44 = arith.mulf %39, %41 : vector<2x32xf32>
    %45 = arith.addf %43, %44 : vector<2x32xf32>
    %46 = math.tanh %45 : vector<2x32xf32>
    %47 = arith.mulf %42, %46 : vector<2x32xf32>
    %c0_i32 = arith.constant 0 : i32
    %48 = vector.broadcast %c0_i32 : i32 to vector<2x1xi32>
    %49 = arith.cmpi sgt, %0, %48 : vector<2x1xi32>
    %50 = vector.shape_cast %49 : vector<2x1xi1> to vector<2x1xi1>
    %51 = vector.broadcast %50 : vector<2x1xi1> to vector<2x32xi1>
    %52 = arith.select %51, %47, %25 : vector<2x32xi1>, vector<2x32xf32>
    %53 = vector.shape_cast %49 : vector<2x1xi1> to vector<2x1xi1>
    %54 = vector.broadcast %53 : vector<2x1xi1> to vector<2x32xi1>
    %55 = arith.select %54, %45, %26 : vector<2x32xi1>, vector<2x32xf32>
    %56 = vector.extract_strided_slice %24 {offsets = [2, 0], sizes = [2, 128], strides = [1, 1]} : vector<16x128xf32> to vector<2x128xf32>
    %cst_17 = arith.constant dense<0.000000e+00> : vector<2x128xf32>
    %57 = tpu.matmul %52, %19, %cst_17 {dimension_numbers = #tpu.dot_dimension_numbers<[1], [0], [0], [1], [0, 0, 1, 1], [], []>} : vector<2x32xf32>, vector<32x128xf32>, vector<2x128xf32> -> vector<2x128xf32>
    %58 = arith.addf %56, %57 : vector<2x128xf32>
    %59 = arith.negf %58 : vector<2x128xf32>
    %60 = math.exp %59 : vector<2x128xf32>
    %cst_18 = arith.constant 1.000000e+00 : f32
    %61 = vector.broadcast %cst_18 : f32 to vector<2x128xf32>
    %62 = arith.addf %61, %60 : vector<2x128xf32>
    %63 = arith.divf %61, %62 : vector<2x128xf32>
    %64 = vector.broadcast %9 : vector<1x128xf32> to vector<2x128xf32>
    %65 = arith.mulf %63, %64 : vector<2x128xf32>
    %66 = vector.broadcast %12 : vector<1x128xf32> to vector<2x128xf32>
    %67 = arith.addf %65, %66 : vector<2x128xf32>
    %68 = vector.extract_strided_slice %67 {offsets = [0, 0], sizes = [2, 32], strides = [1, 1]} : vector<2x128xf32> to vector<2x32xf32>
    %69 = vector.extract_strided_slice %67 {offsets = [0, 32], sizes = [2, 32], strides = [1, 1]} : vector<2x128xf32> to vector<2x32xf32>
    %70 = vector.extract_strided_slice %67 {offsets = [0, 64], sizes = [2, 32], strides = [1, 1]} : vector<2x128xf32> to vector<2x32xf32>
    %71 = vector.extract_strided_slice %67 {offsets = [0, 96], sizes = [2, 32], strides = [1, 1]} : vector<2x128xf32> to vector<2x32xf32>
    %72 = arith.mulf %69, %55 : vector<2x32xf32>
    %73 = arith.mulf %68, %70 : vector<2x32xf32>
    %74 = arith.addf %72, %73 : vector<2x32xf32>
    %75 = math.tanh %74 : vector<2x32xf32>
    %76 = arith.mulf %71, %75 : vector<2x32xf32>
    %c1_i32 = arith.constant 1 : i32
    %77 = vector.broadcast %c1_i32 : i32 to vector<2x1xi32>
    %78 = arith.cmpi sgt, %0, %77 : vector<2x1xi32>
    %79 = vector.shape_cast %78 : vector<2x1xi1> to vector<2x1xi1>
    %80 = vector.broadcast %79 : vector<2x1xi1> to vector<2x32xi1>
    %81 = arith.select %80, %76, %52 : vector<2x32xi1>, vector<2x32xf32>
    %82 = vector.shape_cast %78 : vector<2x1xi1> to vector<2x1xi1>
    %83 = vector.broadcast %82 : vector<2x1xi1> to vector<2x32xi1>
    %84 = arith.select %83, %74, %55 : vector<2x32xi1>, vector<2x32xf32>
    %85 = vector.extract_strided_slice %24 {offsets = [4, 0], sizes = [2, 128], strides = [1, 1]} : vector<16x128xf32> to vector<2x128xf32>
    %cst_19 = arith.constant dense<0.000000e+00> : vector<2x128xf32>
    %86 = tpu.matmul %81, %19, %cst_19 {dimension_numbers = #tpu.dot_dimension_numbers<[1], [0], [0], [1], [0, 0, 1, 1], [], []>} : vector<2x32xf32>, vector<32x128xf32>, vector<2x128xf32> -> vector<2x128xf32>
    %87 = arith.addf %85, %86 : vector<2x128xf32>
    %88 = arith.negf %87 : vector<2x128xf32>
    %89 = math.exp %88 : vector<2x128xf32>
    %cst_20 = arith.constant 1.000000e+00 : f32
    %90 = vector.broadcast %cst_20 : f32 to vector<2x128xf32>
    %91 = arith.addf %90, %89 : vector<2x128xf32>
    %92 = arith.divf %90, %91 : vector<2x128xf32>
    %93 = vector.broadcast %9 : vector<1x128xf32> to vector<2x128xf32>
    %94 = arith.mulf %92, %93 : vector<2x128xf32>
    %95 = vector.broadcast %12 : vector<1x128xf32> to vector<2x128xf32>
    %96 = arith.addf %94, %95 : vector<2x128xf32>
    %97 = vector.extract_strided_slice %96 {offsets = [0, 0], sizes = [2, 32], strides = [1, 1]} : vector<2x128xf32> to vector<2x32xf32>
    %98 = vector.extract_strided_slice %96 {offsets = [0, 32], sizes = [2, 32], strides = [1, 1]} : vector<2x128xf32> to vector<2x32xf32>
    %99 = vector.extract_strided_slice %96 {offsets = [0, 64], sizes = [2, 32], strides = [1, 1]} : vector<2x128xf32> to vector<2x32xf32>
    %100 = vector.extract_strided_slice %96 {offsets = [0, 96], sizes = [2, 32], strides = [1, 1]} : vector<2x128xf32> to vector<2x32xf32>
    %101 = arith.mulf %98, %84 : vector<2x32xf32>
    %102 = arith.mulf %97, %99 : vector<2x32xf32>
    %103 = arith.addf %101, %102 : vector<2x32xf32>
    %104 = math.tanh %103 : vector<2x32xf32>
    %105 = arith.mulf %100, %104 : vector<2x32xf32>
    %c2_i32 = arith.constant 2 : i32
    %106 = vector.broadcast %c2_i32 : i32 to vector<2x1xi32>
    %107 = arith.cmpi sgt, %0, %106 : vector<2x1xi32>
    %108 = vector.shape_cast %107 : vector<2x1xi1> to vector<2x1xi1>
    %109 = vector.broadcast %108 : vector<2x1xi1> to vector<2x32xi1>
    %110 = arith.select %109, %105, %81 : vector<2x32xi1>, vector<2x32xf32>
    %111 = vector.shape_cast %107 : vector<2x1xi1> to vector<2x1xi1>
    %112 = vector.broadcast %111 : vector<2x1xi1> to vector<2x32xi1>
    %113 = arith.select %112, %103, %84 : vector<2x32xi1>, vector<2x32xf32>
    %114 = vector.extract_strided_slice %24 {offsets = [6, 0], sizes = [2, 128], strides = [1, 1]} : vector<16x128xf32> to vector<2x128xf32>
    %cst_21 = arith.constant dense<0.000000e+00> : vector<2x128xf32>
    %115 = tpu.matmul %110, %19, %cst_21 {dimension_numbers = #tpu.dot_dimension_numbers<[1], [0], [0], [1], [0, 0, 1, 1], [], []>} : vector<2x32xf32>, vector<32x128xf32>, vector<2x128xf32> -> vector<2x128xf32>
    %116 = arith.addf %114, %115 : vector<2x128xf32>
    %117 = arith.negf %116 : vector<2x128xf32>
    %118 = math.exp %117 : vector<2x128xf32>
    %cst_22 = arith.constant 1.000000e+00 : f32
    %119 = vector.broadcast %cst_22 : f32 to vector<2x128xf32>
    %120 = arith.addf %119, %118 : vector<2x128xf32>
    %121 = arith.divf %119, %120 : vector<2x128xf32>
    %122 = vector.broadcast %9 : vector<1x128xf32> to vector<2x128xf32>
    %123 = arith.mulf %121, %122 : vector<2x128xf32>
    %124 = vector.broadcast %12 : vector<1x128xf32> to vector<2x128xf32>
    %125 = arith.addf %123, %124 : vector<2x128xf32>
    %126 = vector.extract_strided_slice %125 {offsets = [0, 0], sizes = [2, 32], strides = [1, 1]} : vector<2x128xf32> to vector<2x32xf32>
    %127 = vector.extract_strided_slice %125 {offsets = [0, 32], sizes = [2, 32], strides = [1, 1]} : vector<2x128xf32> to vector<2x32xf32>
    %128 = vector.extract_strided_slice %125 {offsets = [0, 64], sizes = [2, 32], strides = [1, 1]} : vector<2x128xf32> to vector<2x32xf32>
    %129 = vector.extract_strided_slice %125 {offsets = [0, 96], sizes = [2, 32], strides = [1, 1]} : vector<2x128xf32> to vector<2x32xf32>
    %130 = arith.mulf %127, %113 : vector<2x32xf32>
    %131 = arith.mulf %126, %128 : vector<2x32xf32>
    %132 = arith.addf %130, %131 : vector<2x32xf32>
    %133 = math.tanh %132 : vector<2x32xf32>
    %134 = arith.mulf %129, %133 : vector<2x32xf32>
    %c3_i32 = arith.constant 3 : i32
    %135 = vector.broadcast %c3_i32 : i32 to vector<2x1xi32>
    %136 = arith.cmpi sgt, %0, %135 : vector<2x1xi32>
    %137 = vector.shape_cast %136 : vector<2x1xi1> to vector<2x1xi1>
    %138 = vector.broadcast %137 : vector<2x1xi1> to vector<2x32xi1>
    %139 = arith.select %138, %134, %110 : vector<2x32xi1>, vector<2x32xf32>
    %140 = vector.shape_cast %136 : vector<2x1xi1> to vector<2x1xi1>
    %141 = vector.broadcast %140 : vector<2x1xi1> to vector<2x32xi1>
    %142 = arith.select %141, %132, %113 : vector<2x32xi1>, vector<2x32xf32>
    %143 = vector.extract_strided_slice %24 {offsets = [8, 0], sizes = [2, 128], strides = [1, 1]} : vector<16x128xf32> to vector<2x128xf32>
    %cst_23 = arith.constant dense<0.000000e+00> : vector<2x128xf32>
    %144 = tpu.matmul %139, %19, %cst_23 {dimension_numbers = #tpu.dot_dimension_numbers<[1], [0], [0], [1], [0, 0, 1, 1], [], []>} : vector<2x32xf32>, vector<32x128xf32>, vector<2x128xf32> -> vector<2x128xf32>
    %145 = arith.addf %143, %144 : vector<2x128xf32>
    %146 = arith.negf %145 : vector<2x128xf32>
    %147 = math.exp %146 : vector<2x128xf32>
    %cst_24 = arith.constant 1.000000e+00 : f32
    %148 = vector.broadcast %cst_24 : f32 to vector<2x128xf32>
    %149 = arith.addf %148, %147 : vector<2x128xf32>
    %150 = arith.divf %148, %149 : vector<2x128xf32>
    %151 = vector.broadcast %9 : vector<1x128xf32> to vector<2x128xf32>
    %152 = arith.mulf %150, %151 : vector<2x128xf32>
    %153 = vector.broadcast %12 : vector<1x128xf32> to vector<2x128xf32>
    %154 = arith.addf %152, %153 : vector<2x128xf32>
    %155 = vector.extract_strided_slice %154 {offsets = [0, 0], sizes = [2, 32], strides = [1, 1]} : vector<2x128xf32> to vector<2x32xf32>
    %156 = vector.extract_strided_slice %154 {offsets = [0, 32], sizes = [2, 32], strides = [1, 1]} : vector<2x128xf32> to vector<2x32xf32>
    %157 = vector.extract_strided_slice %154 {offsets = [0, 64], sizes = [2, 32], strides = [1, 1]} : vector<2x128xf32> to vector<2x32xf32>
    %158 = vector.extract_strided_slice %154 {offsets = [0, 96], sizes = [2, 32], strides = [1, 1]} : vector<2x128xf32> to vector<2x32xf32>
    %159 = arith.mulf %156, %142 : vector<2x32xf32>
    %160 = arith.mulf %155, %157 : vector<2x32xf32>
    %161 = arith.addf %159, %160 : vector<2x32xf32>
    %162 = math.tanh %161 : vector<2x32xf32>
    %163 = arith.mulf %158, %162 : vector<2x32xf32>
    %c4_i32 = arith.constant 4 : i32
    %164 = vector.broadcast %c4_i32 : i32 to vector<2x1xi32>
    %165 = arith.cmpi sgt, %0, %164 : vector<2x1xi32>
    %166 = vector.shape_cast %165 : vector<2x1xi1> to vector<2x1xi1>
    %167 = vector.broadcast %166 : vector<2x1xi1> to vector<2x32xi1>
    %168 = arith.select %167, %163, %139 : vector<2x32xi1>, vector<2x32xf32>
    %169 = vector.shape_cast %165 : vector<2x1xi1> to vector<2x1xi1>
    %170 = vector.broadcast %169 : vector<2x1xi1> to vector<2x32xi1>
    %171 = arith.select %170, %161, %142 : vector<2x32xi1>, vector<2x32xf32>
    %172 = vector.extract_strided_slice %24 {offsets = [10, 0], sizes = [2, 128], strides = [1, 1]} : vector<16x128xf32> to vector<2x128xf32>
    %cst_25 = arith.constant dense<0.000000e+00> : vector<2x128xf32>
    %173 = tpu.matmul %168, %19, %cst_25 {dimension_numbers = #tpu.dot_dimension_numbers<[1], [0], [0], [1], [0, 0, 1, 1], [], []>} : vector<2x32xf32>, vector<32x128xf32>, vector<2x128xf32> -> vector<2x128xf32>
    %174 = arith.addf %172, %173 : vector<2x128xf32>
    %175 = arith.negf %174 : vector<2x128xf32>
    %176 = math.exp %175 : vector<2x128xf32>
    %cst_26 = arith.constant 1.000000e+00 : f32
    %177 = vector.broadcast %cst_26 : f32 to vector<2x128xf32>
    %178 = arith.addf %177, %176 : vector<2x128xf32>
    %179 = arith.divf %177, %178 : vector<2x128xf32>
    %180 = vector.broadcast %9 : vector<1x128xf32> to vector<2x128xf32>
    %181 = arith.mulf %179, %180 : vector<2x128xf32>
    %182 = vector.broadcast %12 : vector<1x128xf32> to vector<2x128xf32>
    %183 = arith.addf %181, %182 : vector<2x128xf32>
    %184 = vector.extract_strided_slice %183 {offsets = [0, 0], sizes = [2, 32], strides = [1, 1]} : vector<2x128xf32> to vector<2x32xf32>
    %185 = vector.extract_strided_slice %183 {offsets = [0, 32], sizes = [2, 32], strides = [1, 1]} : vector<2x128xf32> to vector<2x32xf32>
    %186 = vector.extract_strided_slice %183 {offsets = [0, 64], sizes = [2, 32], strides = [1, 1]} : vector<2x128xf32> to vector<2x32xf32>
    %187 = vector.extract_strided_slice %183 {offsets = [0, 96], sizes = [2, 32], strides = [1, 1]} : vector<2x128xf32> to vector<2x32xf32>
    %188 = arith.mulf %185, %171 : vector<2x32xf32>
    %189 = arith.mulf %184, %186 : vector<2x32xf32>
    %190 = arith.addf %188, %189 : vector<2x32xf32>
    %191 = math.tanh %190 : vector<2x32xf32>
    %192 = arith.mulf %187, %191 : vector<2x32xf32>
    %c5_i32 = arith.constant 5 : i32
    %193 = vector.broadcast %c5_i32 : i32 to vector<2x1xi32>
    %194 = arith.cmpi sgt, %0, %193 : vector<2x1xi32>
    %195 = vector.shape_cast %194 : vector<2x1xi1> to vector<2x1xi1>
    %196 = vector.broadcast %195 : vector<2x1xi1> to vector<2x32xi1>
    %197 = arith.select %196, %192, %168 : vector<2x32xi1>, vector<2x32xf32>
    %198 = vector.shape_cast %194 : vector<2x1xi1> to vector<2x1xi1>
    %199 = vector.broadcast %198 : vector<2x1xi1> to vector<2x32xi1>
    %200 = arith.select %199, %190, %171 : vector<2x32xi1>, vector<2x32xf32>
    %201 = vector.extract_strided_slice %24 {offsets = [12, 0], sizes = [2, 128], strides = [1, 1]} : vector<16x128xf32> to vector<2x128xf32>
    %cst_27 = arith.constant dense<0.000000e+00> : vector<2x128xf32>
    %202 = tpu.matmul %197, %19, %cst_27 {dimension_numbers = #tpu.dot_dimension_numbers<[1], [0], [0], [1], [0, 0, 1, 1], [], []>} : vector<2x32xf32>, vector<32x128xf32>, vector<2x128xf32> -> vector<2x128xf32>
    %203 = arith.addf %201, %202 : vector<2x128xf32>
    %204 = arith.negf %203 : vector<2x128xf32>
    %205 = math.exp %204 : vector<2x128xf32>
    %cst_28 = arith.constant 1.000000e+00 : f32
    %206 = vector.broadcast %cst_28 : f32 to vector<2x128xf32>
    %207 = arith.addf %206, %205 : vector<2x128xf32>
    %208 = arith.divf %206, %207 : vector<2x128xf32>
    %209 = vector.broadcast %9 : vector<1x128xf32> to vector<2x128xf32>
    %210 = arith.mulf %208, %209 : vector<2x128xf32>
    %211 = vector.broadcast %12 : vector<1x128xf32> to vector<2x128xf32>
    %212 = arith.addf %210, %211 : vector<2x128xf32>
    %213 = vector.extract_strided_slice %212 {offsets = [0, 0], sizes = [2, 32], strides = [1, 1]} : vector<2x128xf32> to vector<2x32xf32>
    %214 = vector.extract_strided_slice %212 {offsets = [0, 32], sizes = [2, 32], strides = [1, 1]} : vector<2x128xf32> to vector<2x32xf32>
    %215 = vector.extract_strided_slice %212 {offsets = [0, 64], sizes = [2, 32], strides = [1, 1]} : vector<2x128xf32> to vector<2x32xf32>
    %216 = vector.extract_strided_slice %212 {offsets = [0, 96], sizes = [2, 32], strides = [1, 1]} : vector<2x128xf32> to vector<2x32xf32>
    %217 = arith.mulf %214, %200 : vector<2x32xf32>
    %218 = arith.mulf %213, %215 : vector<2x32xf32>
    %219 = arith.addf %217, %218 : vector<2x32xf32>
    %220 = math.tanh %219 : vector<2x32xf32>
    %221 = arith.mulf %216, %220 : vector<2x32xf32>
    %c6_i32 = arith.constant 6 : i32
    %222 = vector.broadcast %c6_i32 : i32 to vector<2x1xi32>
    %223 = arith.cmpi sgt, %0, %222 : vector<2x1xi32>
    %224 = vector.shape_cast %223 : vector<2x1xi1> to vector<2x1xi1>
    %225 = vector.broadcast %224 : vector<2x1xi1> to vector<2x32xi1>
    %226 = arith.select %225, %221, %197 : vector<2x32xi1>, vector<2x32xf32>
    %227 = vector.shape_cast %223 : vector<2x1xi1> to vector<2x1xi1>
    %228 = vector.broadcast %227 : vector<2x1xi1> to vector<2x32xi1>
    %229 = arith.select %228, %219, %200 : vector<2x32xi1>, vector<2x32xf32>
    %230 = vector.extract_strided_slice %24 {offsets = [14, 0], sizes = [2, 128], strides = [1, 1]} : vector<16x128xf32> to vector<2x128xf32>
    %cst_29 = arith.constant dense<0.000000e+00> : vector<2x128xf32>
    %231 = tpu.matmul %226, %19, %cst_29 {dimension_numbers = #tpu.dot_dimension_numbers<[1], [0], [0], [1], [0, 0, 1, 1], [], []>} : vector<2x32xf32>, vector<32x128xf32>, vector<2x128xf32> -> vector<2x128xf32>
    %232 = arith.addf %230, %231 : vector<2x128xf32>
    %233 = arith.negf %232 : vector<2x128xf32>
    %234 = math.exp %233 : vector<2x128xf32>
    %cst_30 = arith.constant 1.000000e+00 : f32
    %235 = vector.broadcast %cst_30 : f32 to vector<2x128xf32>
    %236 = arith.addf %235, %234 : vector<2x128xf32>
    %237 = arith.divf %235, %236 : vector<2x128xf32>
    %238 = vector.broadcast %9 : vector<1x128xf32> to vector<2x128xf32>
    %239 = arith.mulf %237, %238 : vector<2x128xf32>
    %240 = vector.broadcast %12 : vector<1x128xf32> to vector<2x128xf32>
    %241 = arith.addf %239, %240 : vector<2x128xf32>
    %242 = vector.extract_strided_slice %241 {offsets = [0, 0], sizes = [2, 32], strides = [1, 1]} : vector<2x128xf32> to vector<2x32xf32>
    %243 = vector.extract_strided_slice %241 {offsets = [0, 32], sizes = [2, 32], strides = [1, 1]} : vector<2x128xf32> to vector<2x32xf32>
    %244 = vector.extract_strided_slice %241 {offsets = [0, 64], sizes = [2, 32], strides = [1, 1]} : vector<2x128xf32> to vector<2x32xf32>
    %245 = vector.extract_strided_slice %241 {offsets = [0, 96], sizes = [2, 32], strides = [1, 1]} : vector<2x128xf32> to vector<2x32xf32>
    %246 = arith.mulf %243, %229 : vector<2x32xf32>
    %247 = arith.mulf %242, %244 : vector<2x32xf32>
    %248 = arith.addf %246, %247 : vector<2x32xf32>
    %249 = math.tanh %248 : vector<2x32xf32>
    %250 = arith.mulf %245, %249 : vector<2x32xf32>
    %c7_i32 = arith.constant 7 : i32
    %251 = vector.broadcast %c7_i32 : i32 to vector<2x1xi32>
    %252 = arith.cmpi sgt, %0, %251 : vector<2x1xi32>
    %253 = vector.shape_cast %252 : vector<2x1xi1> to vector<2x1xi1>
    %254 = vector.broadcast %253 : vector<2x1xi1> to vector<2x32xi1>
    %255 = arith.select %254, %250, %226 : vector<2x32xi1>, vector<2x32xf32>
    %256 = tpu.concatenate %52, %81, %110, %139, %168, %197, %226, %255 in 0 : vector<2x32xf32>, vector<2x32xf32>, vector<2x32xf32>, vector<2x32xf32>, vector<2x32xf32>, vector<2x32xf32>, vector<2x32xf32>, vector<2x32xf32> -> vector<16x32xf32>
    %c0_31 = arith.constant 0 : index
    %c0_32 = arith.constant 0 : index
    %257 = vector.load %arg6[%c0_31, %c0_32] : memref<32x128xf32, #tpu.memory_space<vmem>>, vector<32x128xf32>
    %258 = vector.broadcast %9 : vector<1x128xf32> to vector<32x128xf32>
    %259 = arith.mulf %257, %258 : vector<32x128xf32>
    %c0_33 = arith.constant 0 : index
    %c0_34 = arith.constant 0 : index
    %260 = vector.load %arg7[%c0_33, %c0_34] : memref<32x128xf32, #tpu.memory_space<vmem>>, vector<32x128xf32>
    %261 = vector.broadcast %9 : vector<1x128xf32> to vector<32x128xf32>
    %262 = arith.mulf %260, %261 : vector<32x128xf32>
    %c0_35 = arith.constant 0 : index
    %c0_36 = arith.constant 0 : index
    %263 = vector.load %arg8[%c0_35, %c0_36] : memref<1x128xf32, #tpu.memory_space<vmem>>, vector<1x128xf32>
    %264 = arith.mulf %263, %9 : vector<1x128xf32>
    %cst_37 = arith.constant dense<0.000000e+00> : vector<16x128xf32>
    %265 = tpu.matmul %256, %259, %cst_37 {dimension_numbers = #tpu.dot_dimension_numbers<[1], [0], [0], [1], [0, 0, 1, 1], [], []>} : vector<16x32xf32>, vector<32x128xf32>, vector<16x128xf32> -> vector<16x128xf32>
    %266 = vector.broadcast %264 : vector<1x128xf32> to vector<16x128xf32>
    %267 = arith.addf %265, %266 : vector<16x128xf32>
    %cst_38 = arith.constant 0.000000e+00 : f32
    %268 = vector.broadcast %cst_38 : f32 to vector<2x32xf32>
    %cst_39 = arith.constant 0.000000e+00 : f32
    %269 = vector.broadcast %cst_39 : f32 to vector<2x32xf32>
    %270 = vector.extract_strided_slice %267 {offsets = [0, 0], sizes = [2, 128], strides = [1, 1]} : vector<16x128xf32> to vector<2x128xf32>
    %cst_40 = arith.constant dense<0.000000e+00> : vector<2x128xf32>
    %271 = tpu.matmul %268, %262, %cst_40 {dimension_numbers = #tpu.dot_dimension_numbers<[1], [0], [0], [1], [0, 0, 1, 1], [], []>} : vector<2x32xf32>, vector<32x128xf32>, vector<2x128xf32> -> vector<2x128xf32>
    %272 = arith.addf %270, %271 : vector<2x128xf32>
    %273 = arith.negf %272 : vector<2x128xf32>
    %274 = math.exp %273 : vector<2x128xf32>
    %cst_41 = arith.constant 1.000000e+00 : f32
    %275 = vector.broadcast %cst_41 : f32 to vector<2x128xf32>
    %276 = arith.addf %275, %274 : vector<2x128xf32>
    %277 = arith.divf %275, %276 : vector<2x128xf32>
    %278 = vector.broadcast %9 : vector<1x128xf32> to vector<2x128xf32>
    %279 = arith.mulf %277, %278 : vector<2x128xf32>
    %280 = vector.broadcast %12 : vector<1x128xf32> to vector<2x128xf32>
    %281 = arith.addf %279, %280 : vector<2x128xf32>
    %282 = vector.extract_strided_slice %281 {offsets = [0, 0], sizes = [2, 32], strides = [1, 1]} : vector<2x128xf32> to vector<2x32xf32>
    %283 = vector.extract_strided_slice %281 {offsets = [0, 32], sizes = [2, 32], strides = [1, 1]} : vector<2x128xf32> to vector<2x32xf32>
    %284 = vector.extract_strided_slice %281 {offsets = [0, 64], sizes = [2, 32], strides = [1, 1]} : vector<2x128xf32> to vector<2x32xf32>
    %285 = vector.extract_strided_slice %281 {offsets = [0, 96], sizes = [2, 32], strides = [1, 1]} : vector<2x128xf32> to vector<2x32xf32>
    %286 = arith.mulf %283, %269 : vector<2x32xf32>
    %287 = arith.mulf %282, %284 : vector<2x32xf32>
    %288 = arith.addf %286, %287 : vector<2x32xf32>
    %289 = math.tanh %288 : vector<2x32xf32>
    %290 = arith.mulf %285, %289 : vector<2x32xf32>
    %c0_i32_42 = arith.constant 0 : i32
    %291 = vector.broadcast %c0_i32_42 : i32 to vector<2x1xi32>
    %292 = arith.cmpi sgt, %0, %291 : vector<2x1xi32>
    %293 = vector.shape_cast %292 : vector<2x1xi1> to vector<2x1xi1>
    %294 = vector.broadcast %293 : vector<2x1xi1> to vector<2x32xi1>
    %295 = arith.select %294, %290, %268 : vector<2x32xi1>, vector<2x32xf32>
    %296 = vector.shape_cast %292 : vector<2x1xi1> to vector<2x1xi1>
    %297 = vector.broadcast %296 : vector<2x1xi1> to vector<2x32xi1>
    %298 = arith.select %297, %288, %269 : vector<2x32xi1>, vector<2x32xf32>
    %299 = vector.extract_strided_slice %267 {offsets = [2, 0], sizes = [2, 128], strides = [1, 1]} : vector<16x128xf32> to vector<2x128xf32>
    %cst_43 = arith.constant dense<0.000000e+00> : vector<2x128xf32>
    %300 = tpu.matmul %295, %262, %cst_43 {dimension_numbers = #tpu.dot_dimension_numbers<[1], [0], [0], [1], [0, 0, 1, 1], [], []>} : vector<2x32xf32>, vector<32x128xf32>, vector<2x128xf32> -> vector<2x128xf32>
    %301 = arith.addf %299, %300 : vector<2x128xf32>
    %302 = arith.negf %301 : vector<2x128xf32>
    %303 = math.exp %302 : vector<2x128xf32>
    %cst_44 = arith.constant 1.000000e+00 : f32
    %304 = vector.broadcast %cst_44 : f32 to vector<2x128xf32>
    %305 = arith.addf %304, %303 : vector<2x128xf32>
    %306 = arith.divf %304, %305 : vector<2x128xf32>
    %307 = vector.broadcast %9 : vector<1x128xf32> to vector<2x128xf32>
    %308 = arith.mulf %306, %307 : vector<2x128xf32>
    %309 = vector.broadcast %12 : vector<1x128xf32> to vector<2x128xf32>
    %310 = arith.addf %308, %309 : vector<2x128xf32>
    %311 = vector.extract_strided_slice %310 {offsets = [0, 0], sizes = [2, 32], strides = [1, 1]} : vector<2x128xf32> to vector<2x32xf32>
    %312 = vector.extract_strided_slice %310 {offsets = [0, 32], sizes = [2, 32], strides = [1, 1]} : vector<2x128xf32> to vector<2x32xf32>
    %313 = vector.extract_strided_slice %310 {offsets = [0, 64], sizes = [2, 32], strides = [1, 1]} : vector<2x128xf32> to vector<2x32xf32>
    %314 = vector.extract_strided_slice %310 {offsets = [0, 96], sizes = [2, 32], strides = [1, 1]} : vector<2x128xf32> to vector<2x32xf32>
    %315 = arith.mulf %312, %298 : vector<2x32xf32>
    %316 = arith.mulf %311, %313 : vector<2x32xf32>
    %317 = arith.addf %315, %316 : vector<2x32xf32>
    %318 = math.tanh %317 : vector<2x32xf32>
    %319 = arith.mulf %314, %318 : vector<2x32xf32>
    %c1_i32_45 = arith.constant 1 : i32
    %320 = vector.broadcast %c1_i32_45 : i32 to vector<2x1xi32>
    %321 = arith.cmpi sgt, %0, %320 : vector<2x1xi32>
    %322 = vector.shape_cast %321 : vector<2x1xi1> to vector<2x1xi1>
    %323 = vector.broadcast %322 : vector<2x1xi1> to vector<2x32xi1>
    %324 = arith.select %323, %319, %295 : vector<2x32xi1>, vector<2x32xf32>
    %325 = vector.shape_cast %321 : vector<2x1xi1> to vector<2x1xi1>
    %326 = vector.broadcast %325 : vector<2x1xi1> to vector<2x32xi1>
    %327 = arith.select %326, %317, %298 : vector<2x32xi1>, vector<2x32xf32>
    %328 = vector.extract_strided_slice %267 {offsets = [4, 0], sizes = [2, 128], strides = [1, 1]} : vector<16x128xf32> to vector<2x128xf32>
    %cst_46 = arith.constant dense<0.000000e+00> : vector<2x128xf32>
    %329 = tpu.matmul %324, %262, %cst_46 {dimension_numbers = #tpu.dot_dimension_numbers<[1], [0], [0], [1], [0, 0, 1, 1], [], []>} : vector<2x32xf32>, vector<32x128xf32>, vector<2x128xf32> -> vector<2x128xf32>
    %330 = arith.addf %328, %329 : vector<2x128xf32>
    %331 = arith.negf %330 : vector<2x128xf32>
    %332 = math.exp %331 : vector<2x128xf32>
    %cst_47 = arith.constant 1.000000e+00 : f32
    %333 = vector.broadcast %cst_47 : f32 to vector<2x128xf32>
    %334 = arith.addf %333, %332 : vector<2x128xf32>
    %335 = arith.divf %333, %334 : vector<2x128xf32>
    %336 = vector.broadcast %9 : vector<1x128xf32> to vector<2x128xf32>
    %337 = arith.mulf %335, %336 : vector<2x128xf32>
    %338 = vector.broadcast %12 : vector<1x128xf32> to vector<2x128xf32>
    %339 = arith.addf %337, %338 : vector<2x128xf32>
    %340 = vector.extract_strided_slice %339 {offsets = [0, 0], sizes = [2, 32], strides = [1, 1]} : vector<2x128xf32> to vector<2x32xf32>
    %341 = vector.extract_strided_slice %339 {offsets = [0, 32], sizes = [2, 32], strides = [1, 1]} : vector<2x128xf32> to vector<2x32xf32>
    %342 = vector.extract_strided_slice %339 {offsets = [0, 64], sizes = [2, 32], strides = [1, 1]} : vector<2x128xf32> to vector<2x32xf32>
    %343 = vector.extract_strided_slice %339 {offsets = [0, 96], sizes = [2, 32], strides = [1, 1]} : vector<2x128xf32> to vector<2x32xf32>
    %344 = arith.mulf %341, %327 : vector<2x32xf32>
    %345 = arith.mulf %340, %342 : vector<2x32xf32>
    %346 = arith.addf %344, %345 : vector<2x32xf32>
    %347 = math.tanh %346 : vector<2x32xf32>
    %348 = arith.mulf %343, %347 : vector<2x32xf32>
    %c2_i32_48 = arith.constant 2 : i32
    %349 = vector.broadcast %c2_i32_48 : i32 to vector<2x1xi32>
    %350 = arith.cmpi sgt, %0, %349 : vector<2x1xi32>
    %351 = vector.shape_cast %350 : vector<2x1xi1> to vector<2x1xi1>
    %352 = vector.broadcast %351 : vector<2x1xi1> to vector<2x32xi1>
    %353 = arith.select %352, %348, %324 : vector<2x32xi1>, vector<2x32xf32>
    %354 = vector.shape_cast %350 : vector<2x1xi1> to vector<2x1xi1>
    %355 = vector.broadcast %354 : vector<2x1xi1> to vector<2x32xi1>
    %356 = arith.select %355, %346, %327 : vector<2x32xi1>, vector<2x32xf32>
    %357 = vector.extract_strided_slice %267 {offsets = [6, 0], sizes = [2, 128], strides = [1, 1]} : vector<16x128xf32> to vector<2x128xf32>
    %cst_49 = arith.constant dense<0.000000e+00> : vector<2x128xf32>
    %358 = tpu.matmul %353, %262, %cst_49 {dimension_numbers = #tpu.dot_dimension_numbers<[1], [0], [0], [1], [0, 0, 1, 1], [], []>} : vector<2x32xf32>, vector<32x128xf32>, vector<2x128xf32> -> vector<2x128xf32>
    %359 = arith.addf %357, %358 : vector<2x128xf32>
    %360 = arith.negf %359 : vector<2x128xf32>
    %361 = math.exp %360 : vector<2x128xf32>
    %cst_50 = arith.constant 1.000000e+00 : f32
    %362 = vector.broadcast %cst_50 : f32 to vector<2x128xf32>
    %363 = arith.addf %362, %361 : vector<2x128xf32>
    %364 = arith.divf %362, %363 : vector<2x128xf32>
    %365 = vector.broadcast %9 : vector<1x128xf32> to vector<2x128xf32>
    %366 = arith.mulf %364, %365 : vector<2x128xf32>
    %367 = vector.broadcast %12 : vector<1x128xf32> to vector<2x128xf32>
    %368 = arith.addf %366, %367 : vector<2x128xf32>
    %369 = vector.extract_strided_slice %368 {offsets = [0, 0], sizes = [2, 32], strides = [1, 1]} : vector<2x128xf32> to vector<2x32xf32>
    %370 = vector.extract_strided_slice %368 {offsets = [0, 32], sizes = [2, 32], strides = [1, 1]} : vector<2x128xf32> to vector<2x32xf32>
    %371 = vector.extract_strided_slice %368 {offsets = [0, 64], sizes = [2, 32], strides = [1, 1]} : vector<2x128xf32> to vector<2x32xf32>
    %372 = vector.extract_strided_slice %368 {offsets = [0, 96], sizes = [2, 32], strides = [1, 1]} : vector<2x128xf32> to vector<2x32xf32>
    %373 = arith.mulf %370, %356 : vector<2x32xf32>
    %374 = arith.mulf %369, %371 : vector<2x32xf32>
    %375 = arith.addf %373, %374 : vector<2x32xf32>
    %376 = math.tanh %375 : vector<2x32xf32>
    %377 = arith.mulf %372, %376 : vector<2x32xf32>
    %c3_i32_51 = arith.constant 3 : i32
    %378 = vector.broadcast %c3_i32_51 : i32 to vector<2x1xi32>
    %379 = arith.cmpi sgt, %0, %378 : vector<2x1xi32>
    %380 = vector.shape_cast %379 : vector<2x1xi1> to vector<2x1xi1>
    %381 = vector.broadcast %380 : vector<2x1xi1> to vector<2x32xi1>
    %382 = arith.select %381, %377, %353 : vector<2x32xi1>, vector<2x32xf32>
    %383 = vector.shape_cast %379 : vector<2x1xi1> to vector<2x1xi1>
    %384 = vector.broadcast %383 : vector<2x1xi1> to vector<2x32xi1>
    %385 = arith.select %384, %375, %356 : vector<2x32xi1>, vector<2x32xf32>
    %386 = vector.extract_strided_slice %267 {offsets = [8, 0], sizes = [2, 128], strides = [1, 1]} : vector<16x128xf32> to vector<2x128xf32>
    %cst_52 = arith.constant dense<0.000000e+00> : vector<2x128xf32>
    %387 = tpu.matmul %382, %262, %cst_52 {dimension_numbers = #tpu.dot_dimension_numbers<[1], [0], [0], [1], [0, 0, 1, 1], [], []>} : vector<2x32xf32>, vector<32x128xf32>, vector<2x128xf32> -> vector<2x128xf32>
    %388 = arith.addf %386, %387 : vector<2x128xf32>
    %389 = arith.negf %388 : vector<2x128xf32>
    %390 = math.exp %389 : vector<2x128xf32>
    %cst_53 = arith.constant 1.000000e+00 : f32
    %391 = vector.broadcast %cst_53 : f32 to vector<2x128xf32>
    %392 = arith.addf %391, %390 : vector<2x128xf32>
    %393 = arith.divf %391, %392 : vector<2x128xf32>
    %394 = vector.broadcast %9 : vector<1x128xf32> to vector<2x128xf32>
    %395 = arith.mulf %393, %394 : vector<2x128xf32>
    %396 = vector.broadcast %12 : vector<1x128xf32> to vector<2x128xf32>
    %397 = arith.addf %395, %396 : vector<2x128xf32>
    %398 = vector.extract_strided_slice %397 {offsets = [0, 0], sizes = [2, 32], strides = [1, 1]} : vector<2x128xf32> to vector<2x32xf32>
    %399 = vector.extract_strided_slice %397 {offsets = [0, 32], sizes = [2, 32], strides = [1, 1]} : vector<2x128xf32> to vector<2x32xf32>
    %400 = vector.extract_strided_slice %397 {offsets = [0, 64], sizes = [2, 32], strides = [1, 1]} : vector<2x128xf32> to vector<2x32xf32>
    %401 = vector.extract_strided_slice %397 {offsets = [0, 96], sizes = [2, 32], strides = [1, 1]} : vector<2x128xf32> to vector<2x32xf32>
    %402 = arith.mulf %399, %385 : vector<2x32xf32>
    %403 = arith.mulf %398, %400 : vector<2x32xf32>
    %404 = arith.addf %402, %403 : vector<2x32xf32>
    %405 = math.tanh %404 : vector<2x32xf32>
    %406 = arith.mulf %401, %405 : vector<2x32xf32>
    %c4_i32_54 = arith.constant 4 : i32
    %407 = vector.broadcast %c4_i32_54 : i32 to vector<2x1xi32>
    %408 = arith.cmpi sgt, %0, %407 : vector<2x1xi32>
    %409 = vector.shape_cast %408 : vector<2x1xi1> to vector<2x1xi1>
    %410 = vector.broadcast %409 : vector<2x1xi1> to vector<2x32xi1>
    %411 = arith.select %410, %406, %382 : vector<2x32xi1>, vector<2x32xf32>
    %412 = vector.shape_cast %408 : vector<2x1xi1> to vector<2x1xi1>
    %413 = vector.broadcast %412 : vector<2x1xi1> to vector<2x32xi1>
    %414 = arith.select %413, %404, %385 : vector<2x32xi1>, vector<2x32xf32>
    %415 = vector.extract_strided_slice %267 {offsets = [10, 0], sizes = [2, 128], strides = [1, 1]} : vector<16x128xf32> to vector<2x128xf32>
    %cst_55 = arith.constant dense<0.000000e+00> : vector<2x128xf32>
    %416 = tpu.matmul %411, %262, %cst_55 {dimension_numbers = #tpu.dot_dimension_numbers<[1], [0], [0], [1], [0, 0, 1, 1], [], []>} : vector<2x32xf32>, vector<32x128xf32>, vector<2x128xf32> -> vector<2x128xf32>
    %417 = arith.addf %415, %416 : vector<2x128xf32>
    %418 = arith.negf %417 : vector<2x128xf32>
    %419 = math.exp %418 : vector<2x128xf32>
    %cst_56 = arith.constant 1.000000e+00 : f32
    %420 = vector.broadcast %cst_56 : f32 to vector<2x128xf32>
    %421 = arith.addf %420, %419 : vector<2x128xf32>
    %422 = arith.divf %420, %421 : vector<2x128xf32>
    %423 = vector.broadcast %9 : vector<1x128xf32> to vector<2x128xf32>
    %424 = arith.mulf %422, %423 : vector<2x128xf32>
    %425 = vector.broadcast %12 : vector<1x128xf32> to vector<2x128xf32>
    %426 = arith.addf %424, %425 : vector<2x128xf32>
    %427 = vector.extract_strided_slice %426 {offsets = [0, 0], sizes = [2, 32], strides = [1, 1]} : vector<2x128xf32> to vector<2x32xf32>
    %428 = vector.extract_strided_slice %426 {offsets = [0, 32], sizes = [2, 32], strides = [1, 1]} : vector<2x128xf32> to vector<2x32xf32>
    %429 = vector.extract_strided_slice %426 {offsets = [0, 64], sizes = [2, 32], strides = [1, 1]} : vector<2x128xf32> to vector<2x32xf32>
    %430 = vector.extract_strided_slice %426 {offsets = [0, 96], sizes = [2, 32], strides = [1, 1]} : vector<2x128xf32> to vector<2x32xf32>
    %431 = arith.mulf %428, %414 : vector<2x32xf32>
    %432 = arith.mulf %427, %429 : vector<2x32xf32>
    %433 = arith.addf %431, %432 : vector<2x32xf32>
    %434 = math.tanh %433 : vector<2x32xf32>
    %435 = arith.mulf %430, %434 : vector<2x32xf32>
    %c5_i32_57 = arith.constant 5 : i32
    %436 = vector.broadcast %c5_i32_57 : i32 to vector<2x1xi32>
    %437 = arith.cmpi sgt, %0, %436 : vector<2x1xi32>
    %438 = vector.shape_cast %437 : vector<2x1xi1> to vector<2x1xi1>
    %439 = vector.broadcast %438 : vector<2x1xi1> to vector<2x32xi1>
    %440 = arith.select %439, %435, %411 : vector<2x32xi1>, vector<2x32xf32>
    %441 = vector.shape_cast %437 : vector<2x1xi1> to vector<2x1xi1>
    %442 = vector.broadcast %441 : vector<2x1xi1> to vector<2x32xi1>
    %443 = arith.select %442, %433, %414 : vector<2x32xi1>, vector<2x32xf32>
    %444 = vector.extract_strided_slice %267 {offsets = [12, 0], sizes = [2, 128], strides = [1, 1]} : vector<16x128xf32> to vector<2x128xf32>
    %cst_58 = arith.constant dense<0.000000e+00> : vector<2x128xf32>
    %445 = tpu.matmul %440, %262, %cst_58 {dimension_numbers = #tpu.dot_dimension_numbers<[1], [0], [0], [1], [0, 0, 1, 1], [], []>} : vector<2x32xf32>, vector<32x128xf32>, vector<2x128xf32> -> vector<2x128xf32>
    %446 = arith.addf %444, %445 : vector<2x128xf32>
    %447 = arith.negf %446 : vector<2x128xf32>
    %448 = math.exp %447 : vector<2x128xf32>
    %cst_59 = arith.constant 1.000000e+00 : f32
    %449 = vector.broadcast %cst_59 : f32 to vector<2x128xf32>
    %450 = arith.addf %449, %448 : vector<2x128xf32>
    %451 = arith.divf %449, %450 : vector<2x128xf32>
    %452 = vector.broadcast %9 : vector<1x128xf32> to vector<2x128xf32>
    %453 = arith.mulf %451, %452 : vector<2x128xf32>
    %454 = vector.broadcast %12 : vector<1x128xf32> to vector<2x128xf32>
    %455 = arith.addf %453, %454 : vector<2x128xf32>
    %456 = vector.extract_strided_slice %455 {offsets = [0, 0], sizes = [2, 32], strides = [1, 1]} : vector<2x128xf32> to vector<2x32xf32>
    %457 = vector.extract_strided_slice %455 {offsets = [0, 32], sizes = [2, 32], strides = [1, 1]} : vector<2x128xf32> to vector<2x32xf32>
    %458 = vector.extract_strided_slice %455 {offsets = [0, 64], sizes = [2, 32], strides = [1, 1]} : vector<2x128xf32> to vector<2x32xf32>
    %459 = vector.extract_strided_slice %455 {offsets = [0, 96], sizes = [2, 32], strides = [1, 1]} : vector<2x128xf32> to vector<2x32xf32>
    %460 = arith.mulf %457, %443 : vector<2x32xf32>
    %461 = arith.mulf %456, %458 : vector<2x32xf32>
    %462 = arith.addf %460, %461 : vector<2x32xf32>
    %463 = math.tanh %462 : vector<2x32xf32>
    %464 = arith.mulf %459, %463 : vector<2x32xf32>
    %c6_i32_60 = arith.constant 6 : i32
    %465 = vector.broadcast %c6_i32_60 : i32 to vector<2x1xi32>
    %466 = arith.cmpi sgt, %0, %465 : vector<2x1xi32>
    %467 = vector.shape_cast %466 : vector<2x1xi1> to vector<2x1xi1>
    %468 = vector.broadcast %467 : vector<2x1xi1> to vector<2x32xi1>
    %469 = arith.select %468, %464, %440 : vector<2x32xi1>, vector<2x32xf32>
    %470 = vector.shape_cast %466 : vector<2x1xi1> to vector<2x1xi1>
    %471 = vector.broadcast %470 : vector<2x1xi1> to vector<2x32xi1>
    %472 = arith.select %471, %462, %443 : vector<2x32xi1>, vector<2x32xf32>
    %473 = vector.extract_strided_slice %267 {offsets = [14, 0], sizes = [2, 128], strides = [1, 1]} : vector<16x128xf32> to vector<2x128xf32>
    %cst_61 = arith.constant dense<0.000000e+00> : vector<2x128xf32>
    %474 = tpu.matmul %469, %262, %cst_61 {dimension_numbers = #tpu.dot_dimension_numbers<[1], [0], [0], [1], [0, 0, 1, 1], [], []>} : vector<2x32xf32>, vector<32x128xf32>, vector<2x128xf32> -> vector<2x128xf32>
    %475 = arith.addf %473, %474 : vector<2x128xf32>
    %476 = arith.negf %475 : vector<2x128xf32>
    %477 = math.exp %476 : vector<2x128xf32>
    %cst_62 = arith.constant 1.000000e+00 : f32
    %478 = vector.broadcast %cst_62 : f32 to vector<2x128xf32>
    %479 = arith.addf %478, %477 : vector<2x128xf32>
    %480 = arith.divf %478, %479 : vector<2x128xf32>
    %481 = vector.broadcast %9 : vector<1x128xf32> to vector<2x128xf32>
    %482 = arith.mulf %480, %481 : vector<2x128xf32>
    %483 = vector.broadcast %12 : vector<1x128xf32> to vector<2x128xf32>
    %484 = arith.addf %482, %483 : vector<2x128xf32>
    %485 = vector.extract_strided_slice %484 {offsets = [0, 0], sizes = [2, 32], strides = [1, 1]} : vector<2x128xf32> to vector<2x32xf32>
    %486 = vector.extract_strided_slice %484 {offsets = [0, 32], sizes = [2, 32], strides = [1, 1]} : vector<2x128xf32> to vector<2x32xf32>
    %487 = vector.extract_strided_slice %484 {offsets = [0, 64], sizes = [2, 32], strides = [1, 1]} : vector<2x128xf32> to vector<2x32xf32>
    %488 = vector.extract_strided_slice %484 {offsets = [0, 96], sizes = [2, 32], strides = [1, 1]} : vector<2x128xf32> to vector<2x32xf32>
    %489 = arith.mulf %486, %472 : vector<2x32xf32>
    %490 = arith.mulf %485, %487 : vector<2x32xf32>
    %491 = arith.addf %489, %490 : vector<2x32xf32>
    %492 = math.tanh %491 : vector<2x32xf32>
    %493 = arith.mulf %488, %492 : vector<2x32xf32>
    %c7_i32_63 = arith.constant 7 : i32
    %494 = vector.broadcast %c7_i32_63 : i32 to vector<2x1xi32>
    %495 = arith.cmpi sgt, %0, %494 : vector<2x1xi32>
    %496 = vector.shape_cast %495 : vector<2x1xi1> to vector<2x1xi1>
    %497 = vector.broadcast %496 : vector<2x1xi1> to vector<2x32xi1>
    %498 = arith.select %497, %493, %469 : vector<2x32xi1>, vector<2x32xf32>
    %499 = tpu.concatenate %255, %498 in 0 : vector<2x32xf32>, vector<2x32xf32> -> vector<4x32xf32>
    %c0_64 = arith.constant 0 : index
    %c0_65 = arith.constant 0 : index
    %500 = vector.load %arg9[%c0_64, %c0_65] : memref<32x128xf32, #tpu.memory_space<vmem>>, vector<32x128xf32>
    %cst_66 = arith.constant dense<0.000000e+00> : vector<4x128xf32>
    %501 = tpu.matmul %499, %500, %cst_66 {dimension_numbers = #tpu.dot_dimension_numbers<[1], [0], [0], [1], [0, 0, 1, 1], [], []>} : vector<4x32xf32>, vector<32x128xf32>, vector<4x128xf32> -> vector<4x128xf32>
    %c0_67 = arith.constant 0 : index
    %c0_68 = arith.constant 0 : index
    %502 = vector.load %arg10[%c0_67, %c0_68] : memref<1x128xf32, #tpu.memory_space<vmem>>, vector<1x128xf32>
    %503 = vector.broadcast %502 : vector<1x128xf32> to vector<4x128xf32>
    %504 = arith.addf %501, %503 : vector<4x128xf32>
    %c0_69 = arith.constant 0 : index
    %c0_70 = arith.constant 0 : index
    %505 = vector.load %arg11[%c0_69, %c0_70] : memref<4x128xf32, #tpu.memory_space<vmem>>, vector<4x128xf32>
    tpu.vector_store %arg11[%c0_69, %c0_70], %504 {strides = array<i32>} : memref<4x128xf32, #tpu.memory_space<vmem>>, vector<4x128xf32>,
    return
  }
  func.func @transform_0(%arg0: i32) -> (i32, i32) {
    %c0_i32 = arith.constant 0 : i32
    %c0_i32_0 = arith.constant 0 : i32
    %c0_i32_1 = arith.constant 0 : i32
    return %c0_i32, %c0_i32_0 : i32, i32
  }
  func.func @transform_1(%arg0: i32) -> (i32, i32) {
    %c0_i32 = arith.constant 0 : i32
    %c0_i32_0 = arith.constant 0 : i32
    %c0_i32_1 = arith.constant 0 : i32
    return %c0_i32, %c0_i32_0 : i32, i32
  }
  func.func @transform_2(%arg0: i32) -> (i32, i32) {
    %c0_i32 = arith.constant 0 : i32
    %c0_i32_0 = arith.constant 0 : i32
    %c0_i32_1 = arith.constant 0 : i32
    return %c0_i32, %c0_i32_0 : i32, i32
  }
  func.func @transform_3(%arg0: i32) -> (i32, i32) {
    %c0_i32 = arith.constant 0 : i32
    %c0_i32_0 = arith.constant 0 : i32
    %c0_i32_1 = arith.constant 0 : i32
    return %c0_i32, %c0_i32_0 : i32, i32
  }
  func.func @transform_4(%arg0: i32) -> (i32, i32) {
    %c0_i32 = arith.constant 0 : i32
    %c0_i32_0 = arith.constant 0 : i32
    %c0_i32_1 = arith.constant 0 : i32
    return %c0_i32, %c0_i32_0 : i32, i32
  }
  func.func @transform_5(%arg0: i32) -> (i32, i32) {
    %c0_i32 = arith.constant 0 : i32
    %c0_i32_0 = arith.constant 0 : i32
    %c0_i32_1 = arith.constant 0 : i32
    return %c0_i32, %c0_i32_0 : i32, i32
  }
  func.func @transform_6(%arg0: i32) -> (i32, i32) {
    %c0_i32 = arith.constant 0 : i32
    %c0_i32_0 = arith.constant 0 : i32
    %c0_i32_1 = arith.constant 0 : i32
    return %c0_i32, %c0_i32_0 : i32, i32
  }
  func.func @transform_7(%arg0: i32) -> (i32, i32) {
    %c0_i32 = arith.constant 0 : i32
    %c0_i32_0 = arith.constant 0 : i32
    %c0_i32_1 = arith.constant 0 : i32
    return %c0_i32, %c0_i32_0 : i32, i32
  }
  func.func @transform_8(%arg0: i32) -> (i32, i32) {
    %c0_i32 = arith.constant 0 : i32
    %c0_i32_0 = arith.constant 0 : i32
    %c0_i32_1 = arith.constant 0 : i32
    return %c0_i32, %c0_i32_0 : i32, i32
  }
  func.func @transform_9(%arg0: i32) -> (i32, i32) {
    %c0_i32 = arith.constant 0 : i32
    %c0_i32_0 = arith.constant 0 : i32
    %c0_i32_1 = arith.constant 0 : i32
    return %c0_i32, %c0_i32_0 : i32, i32
  }
  func.func @transform_10(%arg0: i32) -> (i32, i32) {
    %c0_i32 = arith.constant 0 : i32
    %c0_i32_0 = arith.constant 0 : i32
    %c0_i32_1 = arith.constant 0 : i32
    return %c0_i32, %c0_i32_0 : i32, i32
  }
}

</mosaic_0001>

<llo_original>
// kernel: tpu_custom_call.1
$region0: #{tpu_custom_call.1}
  #allocation0 [shape = 'u32[]', space=smem, size = 0x4, offset = 0x4, fixed_abs, tag = 'smem constant byte address 0x4 - core index']
  #allocation1 [shape = 'u32[144,128]{1,0:T(1,128)}', space=vmem, size = 0x12000, scoped, tag = 'internal scratch']
  %s0 = inlined_call_operand.hbm [shape: f32[16,16], index: 0, kind: input, shape index: {}]
  %s1 = inlined_call_operand.vmem [shape: s32[2,1], index: 1, kind: input, shape index: {}]
  %s2 = inlined_call_operand.hbm [shape: f32[16,128], index: 2, kind: input, shape index: {}]
  %s3 = inlined_call_operand.hbm [shape: f32[32,128], index: 3, kind: input, shape index: {}]
  %s4 = inlined_call_operand.vmem [shape: f32[1,128], index: 4, kind: input, shape index: {}]
  %s5 = inlined_call_operand.hbm [shape: f32[32,128], index: 5, kind: input, shape index: {}]
  %s6 = inlined_call_operand.hbm [shape: f32[32,128], index: 6, kind: input, shape index: {}]
  %s7 = inlined_call_operand.vmem [shape: f32[1,128], index: 7, kind: input, shape index: {}]
  %s8 = inlined_call_operand.vmem [shape: f32[32,128], index: 8, kind: input, shape index: {}]
  %s9 = inlined_call_operand.vmem [shape: f32[1,128], index: 9, kind: input, shape index: {}]
  %s10 = inlined_call_operand.hbm [shape: f32[4,128], index: 10, kind: output, shape index: {}]
  %s11 = sld [smem:[#allocation0]]
  $region70: #{tpu_custom_call.1} parent=0
    _
  %s13 = ssub.s32 1, %s11
  %s14 = scalar_select 0, %s13, %s11
  $region1: #{tpu_custom_call.1} parent=0
    #allocation2 [shape = 'u8[8192]{0}', space=vmem, size = 0x2000, scoped, tag = 'input window, operand 0, single buffered']
    #allocation3 [shape = 's32[1]{0}', space=sflag, size = 0x4, scoped, tag = 'scoped memory for tpu_custom_call.1']
    #allocation4 [shape = 's32[1]{0}', space=sflag, size = 0x4, scoped, tag = 'scoped memory for tpu_custom_call.1']
    #allocation5 [shape = 'u8[8192]{0}', space=vmem, size = 0x2000, scoped, tag = 'input window, operand 2, single buffered']
    #allocation6 [shape = 's32[1]{0}', space=sflag, size = 0x4, scoped, tag = 'scoped memory for tpu_custom_call.1']
    #allocation7 [shape = 'u8[16384]{0}', space=vmem, size = 0x4000, scoped, tag = 'input window, operand 3, single buffered']
    #allocation8 [shape = 'u8[16384]{0}', space=vmem, size = 0x4000, scoped, tag = 'input window, operand 5, single buffered']
    #allocation9 [shape = 's32[1]{0}', space=sflag, size = 0x4, scoped, tag = 'scoped memory for tpu_custom_call.1']
    #allocation10 [shape = 'u8[16384]{0}', space=vmem, size = 0x4000, scoped, tag = 'input window, operand 6, single buffered']
    #allocation11 [shape = 'u8[2048]{0}', space=vmem, size = 0x800, scoped, tag = 'output window, operand 0, single buffered']
    %15 = vsyncpa [#allocation3], 0
    %16 = vsyncpa [#allocation6], 0
    %17 = vsyncpa [#allocation9], 0
    %18 = vsyncpa [#allocation4], 0
    // Predicated region
    $region2: #{tpu_custom_call.1} parent=1 // pred_check
      _
    $region3: #{tpu_custom_call.1} parent=1 // pred_check_branch
      %20 = sbr.rel (0) target = $region5
    $region4: #{tpu_custom_call.1} parent=1 // pred_region
      %s22 = ssub.s32 256, 256
      %23 = vsyncadd [#allocation3], %s22
      %s24 = sshll.u32 [#allocation2], 4
      %s25 = int_to_ptr.vmem [resolvable:$true] %s24
      %30 = dma.hbm_to_vmem [thread:$0]  %s0, 256, %s25, [#allocation3], 128, 128, 8
    $region5: #{tpu_custom_call.1} parent=1 // pred_fallthru
      _
    // Predicated region
    $region6: #{tpu_custom_call.1} parent=1 // pred_check
      _
    $region7: #{tpu_custom_call.1} parent=1 // pred_check_branch
      %32 = sbr.rel (0) target = $region9
    $region8: #{tpu_custom_call.1} parent=1 // pred_region
      _
    $region9: #{tpu_custom_call.1} parent=1 // pred_fallthru
      _
    // Predicated region
    $region10: #{tpu_custom_call.1} parent=1 // pred_check
      _
    $region11: #{tpu_custom_call.1} parent=1 // pred_check_branch
      %34 = sbr.rel (0) target = $region13
    $region12: #{tpu_custom_call.1} parent=1 // pred_region
      %s36 = ssub.s32 256, 256
      %37 = vsyncadd [#allocation6], %s36
      %s38 = sshll.u32 [#allocation5], 4
      %s39 = int_to_ptr.vmem [resolvable:$true] %s38
      %44 = dma.hbm_to_vmem [thread:$0]  %s2, 256, %s39, [#allocation6], 128, 128, 8
    $region13: #{tpu_custom_call.1} parent=1 // pred_fallthru
      _
    // Predicated region
    $region14: #{tpu_custom_call.1} parent=1 // pred_check
      _
    $region15: #{tpu_custom_call.1} parent=1 // pred_check_branch
      %46 = sbr.rel (0) target = $region17
    $region16: #{tpu_custom_call.1} parent=1 // pred_region
      %s48 = ssub.s32 512, 512
      %49 = vsyncadd [#allocation6], %s48
      %s50 = sshll.u32 [#allocation7], 4
      %s51 = int_to_ptr.vmem [resolvable:$true] %s50
      %56 = dma.hbm_to_vmem [thread:$0]  %s3, 512, %s51, [#allocation6], 128, 128, 8
    $region17: #{tpu_custom_call.1} parent=1 // pred_fallthru
      _
    // Predicated region
    $region18: #{tpu_custom_call.1} parent=1 // pred_check
      _
    $region19: #{tpu_custom_call.1} parent=1 // pred_check_branch
      %58 = sbr.rel (0) target = $region21
    $region20: #{tpu_custom_call.1} parent=1 // pred_region
      _
    $region21: #{tpu_custom_call.1} parent=1 // pred_fallthru
      _
    // Predicated region
    $region22: #{tpu_custom_call.1} parent=1 // pred_check
      _
    $region23: #{tpu_custom_call.1} parent=1 // pred_check_branch
      %60 = sbr.rel (0) target = $region25
    $region24: #{tpu_custom_call.1} parent=1 // pred_region
      %s62 = ssub.s32 512, 512
      %63 = vsyncadd [#allocation9], %s62
      %s64 = sshll.u32 [#allocation8], 4
      %s65 = int_to_ptr.vmem [resolvable:$true] %s64
      %70 = dma.hbm_to_vmem [thread:$0]  %s5, 512, %s65, [#allocation9], 128, 128, 8
    $region25: #{tpu_custom_call.1} parent=1 // pred_fallthru
      _
    // Predicated region
    $region26: #{tpu_custom_call.1} parent=1 // pred_check
      _
    $region27: #{tpu_custom_call.1} parent=1 // pred_check_branch
      %72 = sbr.rel (0) target = $region29
    $region28: #{tpu_custom_call.1} parent=1 // pred_region
      %s74 = ssub.s32 512, 512
      %75 = vsyncadd [#allocation9], %s74
      %s76 = sshll.u32 [#allocation10], 4
      %s77 = int_to_ptr.vmem [resolvable:$true] %s76
      %82 = dma.hbm_to_vmem [thread:$0]  %s6, 512, %s77, [#allocation9], 128, 128, 8
    $region29: #{tpu_custom_call.1} parent=1 // pred_fallthru
      _
    // Predicated region
    $region30: #{tpu_custom_call.1} parent=1 // pred_check
      _
    $region31: #{tpu_custom_call.1} parent=1 // pred_check_branch
      %84 = sbr.rel (0) target = $region33
    $region32: #{tpu_custom_call.1} parent=1 // pred_region
      _
    $region33: #{tpu_custom_call.1} parent=1 // pred_fallthru
      _
    // Predicated region
    $region34: #{tpu_custom_call.1} parent=1 // pred_check
      _
    $region35: #{tpu_custom_call.1} parent=1 // pred_check_branch
      %86 = sbr.rel (0) target = $region37
    $region36: #{tpu_custom_call.1} parent=1 // pred_region
      _
    $region37: #{tpu_custom_call.1} parent=1 // pred_fallthru
      _
    // Predicated region
    $region38: #{tpu_custom_call.1} parent=1 // pred_check
      _
    $region39: #{tpu_custom_call.1} parent=1 // pred_check_branch
      %88 = sbr.rel (0) target = $region41
    $region40: #{tpu_custom_call.1} parent=1 // pred_region
      _
    $region41: #{tpu_custom_call.1} parent=1 // pred_fallthru
      _
    // Predicated region
    $region42: #{tpu_custom_call.1} parent=1 // pred_check
      _
    $region43: #{tpu_custom_call.1} parent=1 // pred_check_branch
      %90 = sbr.rel (0) target = $region45
    $region44: #{tpu_custom_call.1} parent=1 // pred_region
      %91 = dma.done [#allocation3], 256
    $region45: #{tpu_custom_call.1} parent=1 // pred_fallthru
      _
    // Predicated region
    $region46: #{tpu_custom_call.1} parent=1 // pred_check
      _
    $region47: #{tpu_custom_call.1} parent=1 // pred_check_branch
      %93 = sbr.rel (0) target = $region49
    $region48: #{tpu_custom_call.1} parent=1 // pred_region
      %94 = dma.done [#allocation6], 256
    $region49: #{tpu_custom_call.1} parent=1 // pred_fallthru
      _
    // Predicated region
    $region50: #{tpu_custom_call.1} parent=1 // pred_check
      _
    $region51: #{tpu_custom_call.1} parent=1 // pred_check_branch
      %96 = sbr.rel (0) target = $region53
    $region52: #{tpu_custom_call.1} parent=1 // pred_region
      %97 = dma.done [#allocation6], 512
    $region53: #{tpu_custom_call.1} parent=1 // pred_fallthru
      _
    // Predicated region
    $region54: #{tpu_custom_call.1} parent=1 // pred_check
      _
    $region55: #{tpu_custom_call.1} parent=1 // pred_check_branch
      %99 = sbr.rel (0) target = $region57
    $region56: #{tpu_custom_call.1} parent=1 // pred_region
      %100 = dma.done [#allocation9], 512
    $region57: #{tpu_custom_call.1} parent=1 // pred_fallthru
      _
    // Predicated region
    $region58: #{tpu_custom_call.1} parent=1 // pred_check
      _
    $region59: #{tpu_custom_call.1} parent=1 // pred_check_branch
      %102 = sbr.rel (0) target = $region61
    $region60: #{tpu_custom_call.1} parent=1 // pred_region
      %103 = dma.done [#allocation9], 512
    $region61: #{tpu_custom_call.1} parent=1 // pred_fallthru
      _
    %v104 = vld [vmem:[%s1] sm:$0x3]
    %v105 = vlaneseq
    %v106 = vand.u32 %v105, 127
    %vm107 = vcmp.ge.s32.totalorder %v106, 64
    %vm108 = vcmp.lt.s32.totalorder %v106, 96
    %vm109 = vmand %vm107, %vm108
    %v110 = vsel %vm109, 2.0, 1.0
    %v111 = vsel %vm109, -1.0, 0.0
    %v112 = vld [vmem:[#allocation2] sm:$0xff]
    %v113 = vld [vmem:[#allocation2 + $0x8] sm:$0xff]
    %v114 = vld [vmem:[#allocation5] sm:$0xff]
    %v115 = vld [vmem:[#allocation5 + $0x8] sm:$0xff]
    %v116 = vmul.f32 %v114, %v110
    %v117 = vmul.f32 %v115, %v110
    %v118 = vld [vmem:[#allocation7] sm:$0xff]
    %v119 = vld [vmem:[#allocation7 + $0x8] sm:$0xff]
    %v120 = vld [vmem:[#allocation7 + $0x10] sm:$0xff]
    %v121 = vld [vmem:[#allocation7 + $0x18] sm:$0xff]
    %v122 = vmul.f32 %v118, %v110
    %v123 = vmul.f32 %v119, %v110
    %v124 = vmul.f32 %v120, %v110
    %v125 = vmul.f32 %v121, %v110
    %v126 = vld [vmem:[%s4] sm:$0x1]
    %v127 = vmul.f32 %v126, %v110
    %v129 = vlaneseq
    %v130 = vshrl.u32 %v129, 7
    %v131 = vsub.s32 0, %v130
    %v132 = vrot.slane %v127, %v131
    %vm134 = vcmask 130048
    %v136 = vsel %vm134, %v112, 0
    %v139 = vsel %vm134, %v113, 0
    %141 = vmatprep.subr.mxu0 0.0
    %142 = vmatpush1.msra.mxu0 %v116
    %143 = vmatprep.subr.mxu0 0.0
    %144 = vmatpush1.msra.mxu0 %v117
    %145 = vmatprep.subr.mxu0 0.0
    %146 = vmatpush1.msra.mxu0 0.0
    %147 = vmatprep.subr.mxu0 0.0
    %148 = vmatpush1.msra.mxu0 0.0
    %149 = vmatprep.subr.mxu0 0.0
    %150 = vmatpush1.msra.mxu0 0.0
    %151 = vmatprep.subr.mxu0 0.0
    %152 = vmatpush1.msra.mxu0 0.0
    %153 = vmatprep.subr.mxu0 0.0
    %154 = vmatpush1.msra.mxu0 0.0
    %155 = vmatprep.subr.mxu0 0.0
    %156 = vmatpush1.msra.mxu0 0.0
    %157 = vmatprep.subr.mxu0 0.0
    %158 = vmatpush1.msra.mxu0 0.0
    %159 = vmatprep.subr.mxu0 0.0
    %160 = vmatpush1.msra.mxu0 0.0
    %161 = vmatprep.subr.mxu0 0.0
    %162 = vmatpush1.msra.mxu0 0.0
    %163 = vmatprep.subr.mxu0 0.0
    %164 = vmatpush1.msra.mxu0 0.0
    %165 = vmatprep.subr.mxu0 0.0
    %166 = vmatpush1.msra.mxu0 0.0
    %167 = vmatprep.subr.mxu0 0.0
    %168 = vmatpush1.msra.mxu0 0.0
    %169 = vmatprep.subr.mxu0 0.0
    %170 = vmatpush1.msra.mxu0 0.0
    %171 = vmatprep.subr.mxu0 0.0
    %172 = vmatpush1.msra.mxu0 0.0
    %173 = vmatprep.subr.mxu0 0.0
    %174 = vmatpush1.msra.mxu0 0.0
    %175 = vmatprep.subr.mxu0 0.0
    %176 = vmatpush1.msra.mxu0 0.0
    %177 = vmatprep.subr.mxu0 0.0
    %178 = vmatpush1.msra.mxu0 0.0
    %179 = vmatprep.subr.mxu0 0.0
    %180 = vmatpush1.msra.mxu0 0.0
    %181 = vmatprep.subr.mxu0 0.0
    %182 = vmatpush1.msra.mxu0 0.0
    %183 = vmatprep.subr.mxu0 0.0
    %184 = vmatpush1.msra.mxu0 0.0
    %185 = vmatprep.subr.mxu0 0.0
    %186 = vmatpush1.msra.mxu0 0.0
    %187 = vmatprep.subr.mxu0 0.0
    %188 = vmatpush1.msra.mxu0 0.0
    %189 = vmatprep.subr.mxu0 0.0
    %190 = vmatpush1.msra.mxu0 0.0
    %191 = vmatprep.subr.mxu0 0.0
    %192 = vmatpush1.msra.mxu0 0.0
    %193 = vmatprep.subr.mxu0 0.0
    %194 = vmatpush1.msra.mxu0 0.0
    %195 = vmatprep.subr.mxu0 0.0
    %196 = vmatpush1.msra.mxu0 0.0
    %197 = vmatprep.subr.mxu0 0.0
    %198 = vmatpush1.msra.mxu0 0.0
    %199 = vmatprep.subr.mxu0 0.0
    %200 = vmatpush1.msra.mxu0 0.0
    %201 = vmatprep.subr.mxu0 0.0
    %202 = vmatpush1.msra.mxu0 0.0
    %203 = vmatprep.subr.mxu0 0.0
    %204 = vmatpush1.msra.mxu0 0.0
    %205 = vmatprep.mubr.f32.mxu0 0.0
    %206 = vmatmul.mubr.f32.gmra.mrb[0].mxu0 %v136
    %v207 = vpop.f32.mrb[0].mxu0
    %v208 = vadd.f32 %v132, %v207
    %v209 = vpop.f32.mrb[0].mxu0
    %210 = vmatprep.mubr.f32.mxu0 0.0
    %211 = vmatmul.mubr.f32.gmra.mrb[0].mxu0 %v139
    %v212 = vpop.f32.mrb[0].mxu0
    %v213 = vadd.f32 %v132, %v212
    %v214 = vpop.f32.mrb[0].mxu0
    %215 = vdwg.mxu0
    %vm216 = vcmask 261120
    %v218 = vsel %vm216, 0.0, 0
    %220 = vmatprep.subr.mxu0 0.0
    %221 = vmatpush1.msra.mxu0 %v122
    %222 = vmatprep.subr.mxu0 0.0
    %223 = vmatpush1.msra.mxu0 %v123
    %224 = vmatprep.subr.mxu0 0.0
    %225 = vmatpush1.msra.mxu0 %v124
    %226 = vmatprep.subr.mxu0 0.0
    %227 = vmatpush1.msra.mxu0 %v125
    %228 = vmatprep.subr.mxu0 0.0
    %229 = vmatpush1.msra.mxu0 0.0
    %230 = vmatprep.subr.mxu0 0.0
    %231 = vmatpush1.msra.mxu0 0.0
    %232 = vmatprep.subr.mxu0 0.0
    %233 = vmatpush1.msra.mxu0 0.0
    %234 = vmatprep.subr.mxu0 0.0
    %235 = vmatpush1.msra.mxu0 0.0
    %236 = vmatprep.subr.mxu0 0.0
    %237 = vmatpush1.msra.mxu0 0.0
    %238 = vmatprep.subr.mxu0 0.0
    %239 = vmatpush1.msra.mxu0 0.0
    %240 = vmatprep.subr.mxu0 0.0
    %241 = vmatpush1.msra.mxu0 0.0
    %242 = vmatprep.subr.mxu0 0.0
    %243 = vmatpush1.msra.mxu0 0.0
    %244 = vmatprep.subr.mxu0 0.0
    %245 = vmatpush1.msra.mxu0 0.0
    %246 = vmatprep.subr.mxu0 0.0
    %247 = vmatpush1.msra.mxu0 0.0
    %248 = vmatprep.subr.mxu0 0.0
    %249 = vmatpush1.msra.mxu0 0.0
    %250 = vmatprep.subr.mxu0 0.0
    %251 = vmatpush1.msra.mxu0 0.0
    %252 = vmatprep.subr.mxu0 0.0
    %253 = vmatpush1.msra.mxu0 0.0
    %254 = vmatprep.subr.mxu0 0.0
    %255 = vmatpush1.msra.mxu0 0.0
    %256 = vmatprep.subr.mxu0 0.0
    %257 = vmatpush1.msra.mxu0 0.0
    %258 = vmatprep.subr.mxu0 0.0
    %259 = vmatpush1.msra.mxu0 0.0
    %260 = vmatprep.subr.mxu0 0.0
    %261 = vmatpush1.msra.mxu0 0.0
    %262 = vmatprep.subr.mxu0 0.0
    %263 = vmatpush1.msra.mxu0 0.0
    %264 = vmatprep.subr.mxu0 0.0
    %265 = vmatpush1.msra.mxu0 0.0
    %266 = vmatprep.subr.mxu0 0.0
    %267 = vmatpush1.msra.mxu0 0.0
    %268 = vmatprep.subr.mxu0 0.0
    %269 = vmatpush1.msra.mxu0 0.0
    %270 = vmatprep.subr.mxu0 0.0
    %271 = vmatpush1.msra.mxu0 0.0
    %272 = vmatprep.subr.mxu0 0.0
    %273 = vmatpush1.msra.mxu0 0.0
    %274 = vmatprep.subr.mxu0 0.0
    %275 = vmatpush1.msra.mxu0 0.0
    %276 = vmatprep.subr.mxu0 0.0
    %277 = vmatpush1.msra.mxu0 0.0
    %278 = vmatprep.subr.mxu0 0.0
    %279 = vmatpush1.msra.mxu0 0.0
    %280 = vmatprep.subr.mxu0 0.0
    %281 = vmatpush1.msra.mxu0 0.0
    %282 = vmatprep.subr.mxu0 0.0
    %283 = vmatpush1.msra.mxu0 0.0
    %284 = vmatprep.mubr.f32.mxu0 0.0
    %285 = vmatmul.mubr.f32.gmra.mrb[0].mxu0 %v218
    %v286 = vpop.f32.mrb[0].mxu0
    %v287 = vadd.f32 0.0, %v286
    %v288 = vpop.f32.mrb[0].mxu0
    %289 = vdwg.mxu0
    %v290 = vadd.f32 %v208, %v287
    %v291 = vxor.u32 %v290, 2147483648
    %v292 = vmul.f32 %v291, 1.442695
    %v293 = vpow.pop %v292
    %v294 = vadd.f32 %v293, 1.0
    %v295 = vrcp.pop %v294
    %v296 = vmul.f32 1.0, %v295
    %v297 = vmul.f32 %v296, %v110
    %v298 = vadd.f32 %v297, %v111
    %v299 = vmul.f32 %v298, 0.0
    %301 = vrot.lane.b32.xlu0 %v298, 64
    %v302 = vpop.permute.xlu0 %301
    %v304 = vmul.f32 %v298, %v302
    %306 = vrot.lane.b32.xlu0 %v304, 32
    %v307 = vpop.permute.xlu0 %306
    %v309 = vadd.f32 %v299, %v307
    %v310 = vtanh.pop %v309
    %312 = vrot.lane.b32.xlu0 %v310, 64
    %v313 = vpop.permute.xlu0 %312
    %v315 = vmul.f32 %v298, %v313
    %vm316 = vcmp.gt.s32.totalorder %v104, 0
    %v317 = vsel %vm316, 1, 0
    %318 = vset.pattern.permute.xlu0 0
    %319 = vperm.xlu0 %318, %v317
    %v320 = vpop.permute.xlu0 %319
    %vm321 = vcmp.eq.s32.totalorder %v320, 1
    %v322 = vsel %vm321, %v315, 0.0
    %v323 = vsel %vm321, %v309, 0.0
    %325 = vrot.lane.b32.xlu0 %v322, 32
    %v326 = vpop.permute.xlu0 %325
    %v327 = vsel %vm216, %v326, 0
    %329 = vmatprep.subr.mxu0 0.0
    %330 = vmatpush1.msra.mxu0 %v122
    %331 = vmatprep.subr.mxu0 0.0
    %332 = vmatpush1.msra.mxu0 %v123
    %333 = vmatprep.subr.mxu0 0.0
    %334 = vmatpush1.msra.mxu0 %v124
    %335 = vmatprep.subr.mxu0 0.0
    %336 = vmatpush1.msra.mxu0 %v125
    %337 = vmatprep.subr.mxu0 0.0
    %338 = vmatpush1.msra.mxu0 0.0
    %339 = vmatprep.subr.mxu0 0.0
    %340 = vmatpush1.msra.mxu0 0.0
    %341 = vmatprep.subr.mxu0 0.0
    %342 = vmatpush1.msra.mxu0 0.0
    %343 = vmatprep.subr.mxu0 0.0
    %344 = vmatpush1.msra.mxu0 0.0
    %345 = vmatprep.subr.mxu0 0.0
    %346 = vmatpush1.msra.mxu0 0.0
    %347 = vmatprep.subr.mxu0 0.0
    %348 = vmatpush1.msra.mxu0 0.0
    %349 = vmatprep.subr.mxu0 0.0
    %350 = vmatpush1.msra.mxu0 0.0
    %351 = vmatprep.subr.mxu0 0.0
    %352 = vmatpush1.msra.mxu0 0.0
    %353 = vmatprep.subr.mxu0 0.0
    %354 = vmatpush1.msra.mxu0 0.0
    %355 = vmatprep.subr.mxu0 0.0
    %356 = vmatpush1.msra.mxu0 0.0
    %357 = vmatprep.subr.mxu0 0.0
    %358 = vmatpush1.msra.mxu0 0.0
    %359 = vmatprep.subr.mxu0 0.0
    %360 = vmatpush1.msra.mxu0 0.0
    %361 = vmatprep.subr.mxu0 0.0
    %362 = vmatpush1.msra.mxu0 0.0
    %363 = vmatprep.subr.mxu0 0.0
    %364 = vmatpush1.msra.mxu0 0.0
    %365 = vmatprep.subr.mxu0 0.0
    %366 = vmatpush1.msra.mxu0 0.0
    %367 = vmatprep.subr.mxu0 0.0
    %368 = vmatpush1.msra.mxu0 0.0
    %369 = vmatprep.subr.mxu0 0.0
    %370 = vmatpush1.msra.mxu0 0.0
    %371 = vmatprep.subr.mxu0 0.0
    %372 = vmatpush1.msra.mxu0 0.0
    %373 = vmatprep.subr.mxu0 0.0
    %374 = vmatpush1.msra.mxu0 0.0
    %375 = vmatprep.subr.mxu0 0.0
    %376 = vmatpush1.msra.mxu0 0.0
    %377 = vmatprep.subr.mxu0 0.0
    %378 = vmatpush1.msra.mxu0 0.0
    %379 = vmatprep.subr.mxu0 0.0
    %380 = vmatpush1.msra.mxu0 0.0
    %381 = vmatprep.subr.mxu0 0.0
    %382 = vmatpush1.msra.mxu0 0.0
    %383 = vmatprep.subr.mxu0 0.0
    %384 = vmatpush1.msra.mxu0 0.0
    %385 = vmatprep.subr.mxu0 0.0
    %386 = vmatpush1.msra.mxu0 0.0
    %387 = vmatprep.subr.mxu0 0.0
    %388 = vmatpush1.msra.mxu0 0.0
    %389 = vmatprep.subr.mxu0 0.0
    %390 = vmatpush1.msra.mxu0 0.0
    %391 = vmatprep.subr.mxu0 0.0
    %392 = vmatpush1.msra.mxu0 0.0
    %393 = vmatprep.mubr.f32.mxu0 0.0
    %394 = vmatmul.mubr.f32.gmra.mrb[0].mxu0 %v327
    %v395 = vpop.f32.mrb[0].mxu0
    %v396 = vadd.f32 0.0, %v395
    %v397 = vpop.f32.mrb[0].mxu0
    %398 = vdwg.mxu0
    %v400 = vrot.slane %v396, 6
    %v402 = vadd.f32 %v208, %v400
    %v403 = vxor.u32 %v402, 2147483648
    %v404 = vmul.f32 %v403, 1.442695
    %v405 = vpow.pop %v404
    %v406 = vadd.f32 %v405, 1.0
    %v407 = vrcp.pop %v406
    %v408 = vmul.f32 1.0, %v407
    %v409 = vmul.f32 %v408, %v110
    %v410 = vadd.f32 %v409, %v111
    %v412 = vrot.slane %v323, 6
    %v414 = vmul.f32 %v410, %v412
    %416 = vrot.lane.b32.xlu0 %v410, 64
    %v417 = vpop.permute.xlu0 %416
    %v419 = vmul.f32 %v410, %v417
    %421 = vrot.lane.b32.xlu0 %v419, 32
    %v422 = vpop.permute.xlu0 %421
    %v424 = vadd.f32 %v414, %v422
    %v425 = vtanh.pop %v424
    %427 = vrot.lane.b32.xlu0 %v425, 64
    %v428 = vpop.permute.xlu0 %427
    %v430 = vmul.f32 %v410, %v428
    %vm431 = vcmp.gt.s32.totalorder %v104, 1
    %v432 = vsel %vm431, 1, 0
    %433 = vset.pattern.permute.xlu0 0
    %434 = vperm.xlu0 %433, %v432
    %v435 = vpop.permute.xlu0 %434
    %vm436 = vcmp.eq.s32.totalorder %v435, 1
    %v438 = vrot.slane %v430, 2
    %439 = vrot.lane.b32.xlu0 %v438, 32
    %v440 = vpop.permute.xlu0 %439
    %v443 = vsel %vm436, %v440, %v326
    %v445 = vrot.slane %v424, 2
    %446 = vrot.lane.b32.xlu0 %v445, 96
    %v447 = vpop.permute.xlu0 %446
    %449 = vrot.lane.b32.xlu0 %v323, 96
    %v450 = vpop.permute.xlu0 %449
    %v452 = vsel %vm436, %v447, %v450
    %v454 = vsel %vm216, %v443, 0
    %456 = vmatprep.subr.mxu0 0.0
    %457 = vmatpush1.msra.mxu0 %v122
    %458 = vmatprep.subr.mxu0 0.0
    %459 = vmatpush1.msra.mxu0 %v123
    %460 = vmatprep.subr.mxu0 0.0
    %461 = vmatpush1.msra.mxu0 %v124
    %462 = vmatprep.subr.mxu0 0.0
    %463 = vmatpush1.msra.mxu0 %v125
    %464 = vmatprep.subr.mxu0 0.0
    %465 = vmatpush1.msra.mxu0 0.0
    %466 = vmatprep.subr.mxu0 0.0
    %467 = vmatpush1.msra.mxu0 0.0
    %468 = vmatprep.subr.mxu0 0.0
    %469 = vmatpush1.msra.mxu0 0.0
    %470 = vmatprep.subr.mxu0 0.0
    %471 = vmatpush1.msra.mxu0 0.0
    %472 = vmatprep.subr.mxu0 0.0
    %473 = vmatpush1.msra.mxu0 0.0
    %474 = vmatprep.subr.mxu0 0.0
    %475 = vmatpush1.msra.mxu0 0.0
    %476 = vmatprep.subr.mxu0 0.0
    %477 = vmatpush1.msra.mxu0 0.0
    %478 = vmatprep.subr.mxu0 0.0
    %479 = vmatpush1.msra.mxu0 0.0
    %480 = vmatprep.subr.mxu0 0.0
    %481 = vmatpush1.msra.mxu0 0.0
    %482 = vmatprep.subr.mxu0 0.0
    %483 = vmatpush1.msra.mxu0 0.0
    %484 = vmatprep.subr.mxu0 0.0
    %485 = vmatpush1.msra.mxu0 0.0
    %486 = vmatprep.subr.mxu0 0.0
    %487 = vmatpush1.msra.mxu0 0.0
    %488 = vmatprep.subr.mxu0 0.0
    %489 = vmatpush1.msra.mxu0 0.0
    %490 = vmatprep.subr.mxu0 0.0
    %491 = vmatpush1.msra.mxu0 0.0
    %492 = vmatprep.subr.mxu0 0.0
    %493 = vmatpush1.msra.mxu0 0.0
    %494 = vmatprep.subr.mxu0 0.0
    %495 = vmatpush1.msra.mxu0 0.0
    %496 = vmatprep.subr.mxu0 0.0
    %497 = vmatpush1.msra.mxu0 0.0
    %498 = vmatprep.subr.mxu0 0.0
    %499 = vmatpush1.msra.mxu0 0.0
    %500 = vmatprep.subr.mxu0 0.0
    %501 = vmatpush1.msra.mxu0 0.0
    %502 = vmatprep.subr.mxu0 0.0
    %503 = vmatpush1.msra.mxu0 0.0
    %504 = vmatprep.subr.mxu0 0.0
    %505 = vmatpush1.msra.mxu0 0.0
    %506 = vmatprep.subr.mxu0 0.0
    %507 = vmatpush1.msra.mxu0 0.0
    %508 = vmatprep.subr.mxu0 0.0
    %509 = vmatpush1.msra.mxu0 0.0
    %510 = vmatprep.subr.mxu0 0.0
    %511 = vmatpush1.msra.mxu0 0.0
    %512 = vmatprep.subr.mxu0 0.0
    %513 = vmatpush1.msra.mxu0 0.0
    %514 = vmatprep.subr.mxu0 0.0
    %515 = vmatpush1.msra.mxu0 0.0
    %516 = vmatprep.subr.mxu0 0.0
    %517 = vmatpush1.msra.mxu0 0.0
    %518 = vmatprep.subr.mxu0 0.0
    %519 = vmatpush1.msra.mxu0 0.0
    %520 = vmatprep.mubr.f32.mxu0 0.0
    %521 = vmatmul.mubr.f32.gmra.mrb[0].mxu0 %v454
    %v522 = vpop.f32.mrb[0].mxu0
    %v523 = vadd.f32 0.0, %v522
    %v524 = vpop.f32.mrb[0].mxu0
    %525 = vdwg.mxu0
    %v527 = vrot.slane %v523, 4
    %v529 = vadd.f32 %v208, %v527
    %v530 = vxor.u32 %v529, 2147483648
    %v531 = vmul.f32 %v530, 1.442695
    %v532 = vpow.pop %v531
    %v533 = vadd.f32 %v532, 1.0
    %v534 = vrcp.pop %v533
    %v535 = vmul.f32 1.0, %v534
    %v536 = vmul.f32 %v535, %v110
    %v537 = vadd.f32 %v536, %v111
    %v539 = vrot.slane %v452, 4
    %540 = vrot.lane.b32.xlu0 %v539, 32
    %v541 = vpop.permute.xlu0 %540
    %v543 = vmul.f32 %v537, %v541
    %545 = vrot.lane.b32.xlu0 %v537, 64
    %v546 = vpop.permute.xlu0 %545
    %v548 = vmul.f32 %v537, %v546
    %550 = vrot.lane.b32.xlu0 %v548, 32
    %v551 = vpop.permute.xlu0 %550
    %v553 = vadd.f32 %v543, %v551
    %v554 = vtanh.pop %v553
    %556 = vrot.lane.b32.xlu0 %v554, 64
    %v557 = vpop.permute.xlu0 %556
    %v559 = vmul.f32 %v537, %v557
    %vm560 = vcmp.gt.s32.totalorder %v104, 2
    %v561 = vsel %vm560, 1, 0
    %562 = vset.pattern.permute.xlu0 0
    %563 = vperm.xlu0 %562, %v561
    %v564 = vpop.permute.xlu0 %563
    %vm565 = vcmp.eq.s32.totalorder %v564, 1
    %v567 = vrot.slane %v559, 4
    %568 = vrot.lane.b32.xlu0 %v567, 32
    %v569 = vpop.permute.xlu0 %568
    %v571 = vsel %vm565, %v569, %v443
    %v573 = vrot.slane %v553, 4
    %574 = vrot.lane.b32.xlu0 %v573, 96
    %v575 = vpop.permute.xlu0 %574
    %v577 = vsel %vm565, %v575, %v452
    %v579 = vsel %vm216, %v571, 0
    %581 = vmatprep.subr.mxu0 0.0
    %582 = vmatpush1.msra.mxu0 %v122
    %583 = vmatprep.subr.mxu0 0.0
    %584 = vmatpush1.msra.mxu0 %v123
    %585 = vmatprep.subr.mxu0 0.0
    %586 = vmatpush1.msra.mxu0 %v124
    %587 = vmatprep.subr.mxu0 0.0
    %588 = vmatpush1.msra.mxu0 %v125
    %589 = vmatprep.subr.mxu0 0.0
    %590 = vmatpush1.msra.mxu0 0.0
    %591 = vmatprep.subr.mxu0 0.0
    %592 = vmatpush1.msra.mxu0 0.0
    %593 = vmatprep.subr.mxu0 0.0
    %594 = vmatpush1.msra.mxu0 0.0
    %595 = vmatprep.subr.mxu0 0.0
    %596 = vmatpush1.msra.mxu0 0.0
    %597 = vmatprep.subr.mxu0 0.0
    %598 = vmatpush1.msra.mxu0 0.0
    %599 = vmatprep.subr.mxu0 0.0
    %600 = vmatpush1.msra.mxu0 0.0
    %601 = vmatprep.subr.mxu0 0.0
    %602 = vmatpush1.msra.mxu0 0.0
    %603 = vmatprep.subr.mxu0 0.0
    %604 = vmatpush1.msra.mxu0 0.0
    %605 = vmatprep.subr.mxu0 0.0
    %606 = vmatpush1.msra.mxu0 0.0
    %607 = vmatprep.subr.mxu0 0.0
    %608 = vmatpush1.msra.mxu0 0.0
    %609 = vmatprep.subr.mxu0 0.0
    %610 = vmatpush1.msra.mxu0 0.0
    %611 = vmatprep.subr.mxu0 0.0
    %612 = vmatpush1.msra.mxu0 0.0
    %613 = vmatprep.subr.mxu0 0.0
    %614 = vmatpush1.msra.mxu0 0.0
    %615 = vmatprep.subr.mxu0 0.0
    %616 = vmatpush1.msra.mxu0 0.0
    %617 = vmatprep.subr.mxu0 0.0
    %618 = vmatpush1.msra.mxu0 0.0
    %619 = vmatprep.subr.mxu0 0.0
    %620 = vmatpush1.msra.mxu0 0.0
    %621 = vmatprep.subr.mxu0 0.0
    %622 = vmatpush1.msra.mxu0 0.0
    %623 = vmatprep.subr.mxu0 0.0
    %624 = vmatpush1.msra.mxu0 0.0
    %625 = vmatprep.subr.mxu0 0.0
    %626 = vmatpush1.msra.mxu0 0.0
    %627 = vmatprep.subr.mxu0 0.0
    %628 = vmatpush1.msra.mxu0 0.0
    %629 = vmatprep.subr.mxu0 0.0
    %630 = vmatpush1.msra.mxu0 0.0
    %631 = vmatprep.subr.mxu0 0.0
    %632 = vmatpush1.msra.mxu0 0.0
    %633 = vmatprep.subr.mxu0 0.0
    %634 = vmatpush1.msra.mxu0 0.0
    %635 = vmatprep.subr.mxu0 0.0
    %636 = vmatpush1.msra.mxu0 0.0
    %637 = vmatprep.subr.mxu0 0.0
    %638 = vmatpush1.msra.mxu0 0.0
    %639 = vmatprep.subr.mxu0 0.0
    %640 = vmatpush1.msra.mxu0 0.0
    %641 = vmatprep.subr.mxu0 0.0
    %642 = vmatpush1.msra.mxu0 0.0
    %643 = vmatprep.subr.mxu0 0.0
    %644 = vmatpush1.msra.mxu0 0.0
    %645 = vmatprep.mubr.f32.mxu0 0.0
    %646 = vmatmul.mubr.f32.gmra.mrb[0].mxu0 %v579
    %v647 = vpop.f32.mrb[0].mxu0
    %v648 = vadd.f32 0.0, %v647
    %v649 = vpop.f32.mrb[0].mxu0
    %650 = vdwg.mxu0
    %v652 = vrot.slane %v648, 2
    %v654 = vadd.f32 %v208, %v652
    %v655 = vxor.u32 %v654, 2147483648
    %v656 = vmul.f32 %v655, 1.442695
    %v657 = vpow.pop %v656
    %v658 = vadd.f32 %v657, 1.0
    %v659 = vrcp.pop %v658
    %v660 = vmul.f32 1.0, %v659
    %v661 = vmul.f32 %v660, %v110
    %v662 = vadd.f32 %v661, %v111
    %v664 = vrot.slane %v577, 2
    %665 = vrot.lane.b32.xlu0 %v664, 32
    %v666 = vpop.permute.xlu0 %665
    %v668 = vmul.f32 %v662, %v666
    %670 = vrot.lane.b32.xlu0 %v662, 64
    %v671 = vpop.permute.xlu0 %670
    %v673 = vmul.f32 %v662, %v671
    %675 = vrot.lane.b32.xlu0 %v673, 32
    %v676 = vpop.permute.xlu0 %675
    %v678 = vadd.f32 %v668, %v676
    %v679 = vtanh.pop %v678
    %681 = vrot.lane.b32.xlu0 %v679, 64
    %v682 = vpop.permute.xlu0 %681
    %v684 = vmul.f32 %v662, %v682
    %vm685 = vcmp.gt.s32.totalorder %v104, 3
    %v686 = vsel %vm685, 1, 0
    %687 = vset.pattern.permute.xlu0 0
    %688 = vperm.xlu0 %687, %v686
    %v689 = vpop.permute.xlu0 %688
    %vm690 = vcmp.eq.s32.totalorder %v689, 1
    %v692 = vrot.slane %v684, 6
    %693 = vrot.lane.b32.xlu0 %v692, 32
    %v694 = vpop.permute.xlu0 %693
    %v696 = vsel %vm690, %v694, %v571
    %v698 = vrot.slane %v678, 6
    %699 = vrot.lane.b32.xlu0 %v698, 96
    %v700 = vpop.permute.xlu0 %699
    %v702 = vsel %vm690, %v700, %v577
    %v704 = vsel %vm216, %v696, 0
    %706 = vmatprep.subr.mxu0 0.0
    %707 = vmatpush1.msra.mxu0 %v122
    %708 = vmatprep.subr.mxu0 0.0
    %709 = vmatpush1.msra.mxu0 %v123
    %710 = vmatprep.subr.mxu0 0.0
    %711 = vmatpush1.msra.mxu0 %v124
    %712 = vmatprep.subr.mxu0 0.0
    %713 = vmatpush1.msra.mxu0 %v125
    %714 = vmatprep.subr.mxu0 0.0
    %715 = vmatpush1.msra.mxu0 0.0
    %716 = vmatprep.subr.mxu0 0.0
    %717 = vmatpush1.msra.mxu0 0.0
    %718 = vmatprep.subr.mxu0 0.0
    %719 = vmatpush1.msra.mxu0 0.0
    %720 = vmatprep.subr.mxu0 0.0
    %721 = vmatpush1.msra.mxu0 0.0
    %722 = vmatprep.subr.mxu0 0.0
    %723 = vmatpush1.msra.mxu0 0.0
    %724 = vmatprep.subr.mxu0 0.0
    %725 = vmatpush1.msra.mxu0 0.0
    %726 = vmatprep.subr.mxu0 0.0
    %727 = vmatpush1.msra.mxu0 0.0
    %728 = vmatprep.subr.mxu0 0.0
    %729 = vmatpush1.msra.mxu0 0.0
    %730 = vmatprep.subr.mxu0 0.0
    %731 = vmatpush1.msra.mxu0 0.0
    %732 = vmatprep.subr.mxu0 0.0
    %733 = vmatpush1.msra.mxu0 0.0
    %734 = vmatprep.subr.mxu0 0.0
    %735 = vmatpush1.msra.mxu0 0.0
    %736 = vmatprep.subr.mxu0 0.0
    %737 = vmatpush1.msra.mxu0 0.0
    %738 = vmatprep.subr.mxu0 0.0
    %739 = vmatpush1.msra.mxu0 0.0
    %740 = vmatprep.subr.mxu0 0.0
    %741 = vmatpush1.msra.mxu0 0.0
    %742 = vmatprep.subr.mxu0 0.0
    %743 = vmatpush1.msra.mxu0 0.0
    %744 = vmatprep.subr.mxu0 0.0
    %745 = vmatpush1.msra.mxu0 0.0
    %746 = vmatprep.subr.mxu0 0.0
    %747 = vmatpush1.msra.mxu0 0.0
    %748 = vmatprep.subr.mxu0 0.0
    %749 = vmatpush1.msra.mxu0 0.0
    %750 = vmatprep.subr.mxu0 0.0
    %751 = vmatpush1.msra.mxu0 0.0
    %752 = vmatprep.subr.mxu0 0.0
    %753 = vmatpush1.msra.mxu0 0.0
    %754 = vmatprep.subr.mxu0 0.0
    %755 = vmatpush1.msra.mxu0 0.0
    %756 = vmatprep.subr.mxu0 0.0
    %757 = vmatpush1.msra.mxu0 0.0
    %758 = vmatprep.subr.mxu0 0.0
    %759 = vmatpush1.msra.mxu0 0.0
    %760 = vmatprep.subr.mxu0 0.0
    %761 = vmatpush1.msra.mxu0 0.0
    %762 = vmatprep.subr.mxu0 0.0
    %763 = vmatpush1.msra.mxu0 0.0
    %764 = vmatprep.subr.mxu0 0.0
    %765 = vmatpush1.msra.mxu0 0.0
    %766 = vmatprep.subr.mxu0 0.0
    %767 = vmatpush1.msra.mxu0 0.0
    %768 = vmatprep.subr.mxu0 0.0
    %769 = vmatpush1.msra.mxu0 0.0
    %770 = vmatprep.mubr.f32.mxu0 0.0
    %771 = vmatmul.mubr.f32.gmra.mrb[0].mxu0 %v704
    %v772 = vpop.f32.mrb[0].mxu0
    %v773 = vadd.f32 0.0, %v772
    %v774 = vpop.f32.mrb[0].mxu0
    %775 = vdwg.mxu0
    %v776 = vadd.f32 %v213, %v773
    %v777 = vxor.u32 %v776, 2147483648
    %v778 = vmul.f32 %v777, 1.442695
    %v779 = vpow.pop %v778
    %v780 = vadd.f32 %v779, 1.0
    %v781 = vrcp.pop %v780
    %v782 = vmul.f32 1.0, %v781
    %v783 = vmul.f32 %v782, %v110
    %v784 = vadd.f32 %v783, %v111
    %786 = vrot.lane.b32.xlu0 %v702, 32
    %v787 = vpop.permute.xlu0 %786
    %v789 = vmul.f32 %v784, %v787
    %791 = vrot.lane.b32.xlu0 %v784, 64
    %v792 = vpop.permute.xlu0 %791
    %v794 = vmul.f32 %v784, %v792
    %796 = vrot.lane.b32.xlu0 %v794, 32
    %v797 = vpop.permute.xlu0 %796
    %v799 = vadd.f32 %v789, %v797
    %v800 = vtanh.pop %v799
    %802 = vrot.lane.b32.xlu0 %v800, 64
    %v803 = vpop.permute.xlu0 %802
    %v805 = vmul.f32 %v784, %v803
    %vm806 = vcmp.gt.s32.totalorder %v104, 4
    %v807 = vsel %vm806, 1, 0
    %808 = vset.pattern.permute.xlu0 0
    %809 = vperm.xlu0 %808, %v807
    %v810 = vpop.permute.xlu0 %809
    %vm811 = vcmp.eq.s32.totalorder %v810, 1
    %812 = vrot.lane.b32.xlu0 %v696, 96
    %v813 = vpop.permute.xlu0 %812
    %v815 = vsel %vm811, %v805, %v813
    %v816 = vsel %vm811, %v799, %v787
    %818 = vrot.lane.b32.xlu0 %v815, 32
    %v819 = vpop.permute.xlu0 %818
    %v820 = vsel %vm216, %v819, 0
    %822 = vmatprep.subr.mxu0 0.0
    %823 = vmatpush1.msra.mxu0 %v122
    %824 = vmatprep.subr.mxu0 0.0
    %825 = vmatpush1.msra.mxu0 %v123
    %826 = vmatprep.subr.mxu0 0.0
    %827 = vmatpush1.msra.mxu0 %v124
    %828 = vmatprep.subr.mxu0 0.0
    %829 = vmatpush1.msra.mxu0 %v125
    %830 = vmatprep.subr.mxu0 0.0
    %831 = vmatpush1.msra.mxu0 0.0
    %832 = vmatprep.subr.mxu0 0.0
    %833 = vmatpush1.msra.mxu0 0.0
    %834 = vmatprep.subr.mxu0 0.0
    %835 = vmatpush1.msra.mxu0 0.0
    %836 = vmatprep.subr.mxu0 0.0
    %837 = vmatpush1.msra.mxu0 0.0
    %838 = vmatprep.subr.mxu0 0.0
    %839 = vmatpush1.msra.mxu0 0.0
    %840 = vmatprep.subr.mxu0 0.0
    %841 = vmatpush1.msra.mxu0 0.0
    %842 = vmatprep.subr.mxu0 0.0
    %843 = vmatpush1.msra.mxu0 0.0
    %844 = vmatprep.subr.mxu0 0.0
    %845 = vmatpush1.msra.mxu0 0.0
    %846 = vmatprep.subr.mxu0 0.0
    %847 = vmatpush1.msra.mxu0 0.0
    %848 = vmatprep.subr.mxu0 0.0
    %849 = vmatpush1.msra.mxu0 0.0
    %850 = vmatprep.subr.mxu0 0.0
    %851 = vmatpush1.msra.mxu0 0.0
    %852 = vmatprep.subr.mxu0 0.0
    %853 = vmatpush1.msra.mxu0 0.0
    %854 = vmatprep.subr.mxu0 0.0
    %855 = vmatpush1.msra.mxu0 0.0
    %856 = vmatprep.subr.mxu0 0.0
    %857 = vmatpush1.msra.mxu0 0.0
    %858 = vmatprep.subr.mxu0 0.0
    %859 = vmatpush1.msra.mxu0 0.0
    %860 = vmatprep.subr.mxu0 0.0
    %861 = vmatpush1.msra.mxu0 0.0
    %862 = vmatprep.subr.mxu0 0.0
    %863 = vmatpush1.msra.mxu0 0.0
    %864 = vmatprep.subr.mxu0 0.0
    %865 = vmatpush1.msra.mxu0 0.0
    %866 = vmatprep.subr.mxu0 0.0
    %867 = vmatpush1.msra.mxu0 0.0
    %868 = vmatprep.subr.mxu0 0.0
    %869 = vmatpush1.msra.mxu0 0.0
    %870 = vmatprep.subr.mxu0 0.0
    %871 = vmatpush1.msra.mxu0 0.0
    %872 = vmatprep.subr.mxu0 0.0
    %873 = vmatpush1.msra.mxu0 0.0
    %874 = vmatprep.subr.mxu0 0.0
    %875 = vmatpush1.msra.mxu0 0.0
    %876 = vmatprep.subr.mxu0 0.0
    %877 = vmatpush1.msra.mxu0 0.0
    %878 = vmatprep.subr.mxu0 0.0
    %879 = vmatpush1.msra.mxu0 0.0
    %880 = vmatprep.subr.mxu0 0.0
    %881 = vmatpush1.msra.mxu0 0.0
    %882 = vmatprep.subr.mxu0 0.0
    %883 = vmatpush1.msra.mxu0 0.0
    %884 = vmatprep.subr.mxu0 0.0
    %885 = vmatpush1.msra.mxu0 0.0
    %886 = vmatprep.mubr.f32.mxu0 0.0
    %887 = vmatmul.mubr.f32.gmra.mrb[0].mxu0 %v820
    %v888 = vpop.f32.mrb[0].mxu0
    %v889 = vadd.f32 0.0, %v888
    %v890 = vpop.f32.mrb[0].mxu0
    %891 = vdwg.mxu0
    %v893 = vrot.slane %v889, 6
    %v895 = vadd.f32 %v213, %v893
    %v896 = vxor.u32 %v895, 2147483648
    %v897 = vmul.f32 %v896, 1.442695
    %v898 = vpow.pop %v897
    %v899 = vadd.f32 %v898, 1.0
    %v900 = vrcp.pop %v899
    %v901 = vmul.f32 1.0, %v900
    %v902 = vmul.f32 %v901, %v110
    %v903 = vadd.f32 %v902, %v111
    %v905 = vrot.slane %v816, 6
    %v907 = vmul.f32 %v903, %v905
    %909 = vrot.lane.b32.xlu0 %v903, 64
    %v910 = vpop.permute.xlu0 %909
    %v912 = vmul.f32 %v903, %v910
    %914 = vrot.lane.b32.xlu0 %v912, 32
    %v915 = vpop.permute.xlu0 %914
    %v917 = vadd.f32 %v907, %v915
    %v918 = vtanh.pop %v917
    %920 = vrot.lane.b32.xlu0 %v918, 64
    %v921 = vpop.permute.xlu0 %920
    %v923 = vmul.f32 %v903, %v921
    %vm924 = vcmp.gt.s32.totalorder %v104, 5
    %v925 = vsel %vm924, 1, 0
    %926 = vset.pattern.permute.xlu0 0
    %927 = vperm.xlu0 %926, %v925
    %v928 = vpop.permute.xlu0 %927
    %vm929 = vcmp.eq.s32.totalorder %v928, 1
    %v931 = vrot.slane %v923, 2
    %932 = vrot.lane.b32.xlu0 %v931, 32
    %v933 = vpop.permute.xlu0 %932
    %v936 = vsel %vm929, %v933, %v819
    %v938 = vrot.slane %v917, 2
    %939 = vrot.lane.b32.xlu0 %v938, 96
    %v940 = vpop.permute.xlu0 %939
    %942 = vrot.lane.b32.xlu0 %v816, 96
    %v943 = vpop.permute.xlu0 %942
    %v945 = vsel %vm929, %v940, %v943
    %v947 = vsel %vm216, %v936, 0
    %949 = vmatprep.subr.mxu0 0.0
    %950 = vmatpush1.msra.mxu0 %v122
    %951 = vmatprep.subr.mxu0 0.0
    %952 = vmatpush1.msra.mxu0 %v123
    %953 = vmatprep.subr.mxu0 0.0
    %954 = vmatpush1.msra.mxu0 %v124
    %955 = vmatprep.subr.mxu0 0.0
    %956 = vmatpush1.msra.mxu0 %v125
    %957 = vmatprep.subr.mxu0 0.0
    %958 = vmatpush1.msra.mxu0 0.0
    %959 = vmatprep.subr.mxu0 0.0
    %960 = vmatpush1.msra.mxu0 0.0
    %961 = vmatprep.subr.mxu0 0.0
    %962 = vmatpush1.msra.mxu0 0.0
    %963 = vmatprep.subr.mxu0 0.0
    %964 = vmatpush1.msra.mxu0 0.0
    %965 = vmatprep.subr.mxu0 0.0
    %966 = vmatpush1.msra.mxu0 0.0
    %967 = vmatprep.subr.mxu0 0.0
    %968 = vmatpush1.msra.mxu0 0.0
    %969 = vmatprep.subr.mxu0 0.0
    %970 = vmatpush1.msra.mxu0 0.0
    %971 = vmatprep.subr.mxu0 0.0
    %972 = vmatpush1.msra.mxu0 0.0
    %973 = vmatprep.subr.mxu0 0.0
    %974 = vmatpush1.msra.mxu0 0.0
    %975 = vmatprep.subr.mxu0 0.0
    %976 = vmatpush1.msra.mxu0 0.0
    %977 = vmatprep.subr.mxu0 0.0
    %978 = vmatpush1.msra.mxu0 0.0
    %979 = vmatprep.subr.mxu0 0.0
    %980 = vmatpush1.msra.mxu0 0.0
    %981 = vmatprep.subr.mxu0 0.0
    %982 = vmatpush1.msra.mxu0 0.0
    %983 = vmatprep.subr.mxu0 0.0
    %984 = vmatpush1.msra.mxu0 0.0
    %985 = vmatprep.subr.mxu0 0.0
    %986 = vmatpush1.msra.mxu0 0.0
    %987 = vmatprep.subr.mxu0 0.0
    %988 = vmatpush1.msra.mxu0 0.0
    %989 = vmatprep.subr.mxu0 0.0
    %990 = vmatpush1.msra.mxu0 0.0
    %991 = vmatprep.subr.mxu0 0.0
    %992 = vmatpush1.msra.mxu0 0.0
    %993 = vmatprep.subr.mxu0 0.0
    %994 = vmatpush1.msra.mxu0 0.0
    %995 = vmatprep.subr.mxu0 0.0
    %996 = vmatpush1.msra.mxu0 0.0
    %997 = vmatprep.subr.mxu0 0.0
    %998 = vmatpush1.msra.mxu0 0.0
    %999 = vmatprep.subr.mxu0 0.0
    %1000 = vmatpush1.msra.mxu0 0.0
    %1001 = vmatprep.subr.mxu0 0.0
    %1002 = vmatpush1.msra.mxu0 0.0
    %1003 = vmatprep.subr.mxu0 0.0
    %1004 = vmatpush1.msra.mxu0 0.0
    %1005 = vmatprep.subr.mxu0 0.0
    %1006 = vmatpush1.msra.mxu0 0.0
    %1007 = vmatprep.subr.mxu0 0.0
    %1008 = vmatpush1.msra.mxu0 0.0
    %1009 = vmatprep.subr.mxu0 0.0
    %1010 = vmatpush1.msra.mxu0 0.0
    %1011 = vmatprep.subr.mxu0 0.0
    %1012 = vmatpush1.msra.mxu0 0.0
    %1013 = vmatprep.mubr.f32.mxu0 0.0
    %1014 = vmatmul.mubr.f32.gmra.mrb[0].mxu0 %v947
    %v1015 = vpop.f32.mrb[0].mxu0
    %v1016 = vadd.f32 0.0, %v1015
    %v1017 = vpop.f32.mrb[0].mxu0
    %1018 = vdwg.mxu0
    %v1020 = vrot.slane %v1016, 4
    %v1022 = vadd.f32 %v213, %v1020
    %v1023 = vxor.u32 %v1022, 2147483648
    %v1024 = vmul.f32 %v1023, 1.442695
    %v1025 = vpow.pop %v1024
    %v1026 = vadd.f32 %v1025, 1.0
    %v1027 = vrcp.pop %v1026
    %v1028 = vmul.f32 1.0, %v1027
    %v1029 = vmul.f32 %v1028, %v110
    %v1030 = vadd.f32 %v1029, %v111
    %v1032 = vrot.slane %v945, 4
    %1033 = vrot.lane.b32.xlu0 %v1032, 32
    %v1034 = vpop.permute.xlu0 %1033
    %v1036 = vmul.f32 %v1030, %v1034
    %1038 = vrot.lane.b32.xlu0 %v1030, 64
    %v1039 = vpop.permute.xlu0 %1038
    %v1041 = vmul.f32 %v1030, %v1039
    %1043 = vrot.lane.b32.xlu0 %v1041, 32
    %v1044 = vpop.permute.xlu0 %1043
    %v1046 = vadd.f32 %v1036, %v1044
    %v1047 = vtanh.pop %v1046
    %1049 = vrot.lane.b32.xlu0 %v1047, 64
    %v1050 = vpop.permute.xlu0 %1049
    %v1052 = vmul.f32 %v1030, %v1050
    %vm1053 = vcmp.gt.s32.totalorder %v104, 6
    %v1054 = vsel %vm1053, 1, 0
    %1055 = vset.pattern.permute.xlu0 0
    %1056 = vperm.xlu0 %1055, %v1054
    %v1057 = vpop.permute.xlu0 %1056
    %vm1058 = vcmp.eq.s32.totalorder %v1057, 1
    %v1060 = vrot.slane %v1052, 4
    %1061 = vrot.lane.b32.xlu0 %v1060, 32
    %v1062 = vpop.permute.xlu0 %1061
    %v1064 = vsel %vm1058, %v1062, %v936
    %v1066 = vrot.slane %v1046, 4
    %1067 = vrot.lane.b32.xlu0 %v1066, 96
    %v1068 = vpop.permute.xlu0 %1067
    %v1070 = vsel %vm1058, %v1068, %v945
    %v1072 = vsel %vm216, %v1064, 0
    %1074 = vmatprep.subr.mxu0 0.0
    %1075 = vmatpush1.msra.mxu0 %v122
    %1076 = vmatprep.subr.mxu0 0.0
    %1077 = vmatpush1.msra.mxu0 %v123
    %1078 = vmatprep.subr.mxu0 0.0
    %1079 = vmatpush1.msra.mxu0 %v124
    %1080 = vmatprep.subr.mxu0 0.0
    %1081 = vmatpush1.msra.mxu0 %v125
    %1082 = vmatprep.subr.mxu0 0.0
    %1083 = vmatpush1.msra.mxu0 0.0
    %1084 = vmatprep.subr.mxu0 0.0
    %1085 = vmatpush1.msra.mxu0 0.0
    %1086 = vmatprep.subr.mxu0 0.0
    %1087 = vmatpush1.msra.mxu0 0.0
    %1088 = vmatprep.subr.mxu0 0.0
    %1089 = vmatpush1.msra.mxu0 0.0
    %1090 = vmatprep.subr.mxu0 0.0
    %1091 = vmatpush1.msra.mxu0 0.0
    %1092 = vmatprep.subr.mxu0 0.0
    %1093 = vmatpush1.msra.mxu0 0.0
    %1094 = vmatprep.subr.mxu0 0.0
    %1095 = vmatpush1.msra.mxu0 0.0
    %1096 = vmatprep.subr.mxu0 0.0
    %1097 = vmatpush1.msra.mxu0 0.0
    %1098 = vmatprep.subr.mxu0 0.0
    %1099 = vmatpush1.msra.mxu0 0.0
    %1100 = vmatprep.subr.mxu0 0.0
    %1101 = vmatpush1.msra.mxu0 0.0
    %1102 = vmatprep.subr.mxu0 0.0
    %1103 = vmatpush1.msra.mxu0 0.0
    %1104 = vmatprep.subr.mxu0 0.0
    %1105 = vmatpush1.msra.mxu0 0.0
    %1106 = vmatprep.subr.mxu0 0.0
    %1107 = vmatpush1.msra.mxu0 0.0
    %1108 = vmatprep.subr.mxu0 0.0
    %1109 = vmatpush1.msra.mxu0 0.0
    %1110 = vmatprep.subr.mxu0 0.0
    %1111 = vmatpush1.msra.mxu0 0.0
    %1112 = vmatprep.subr.mxu0 0.0
    %1113 = vmatpush1.msra.mxu0 0.0
    %1114 = vmatprep.subr.mxu0 0.0
    %1115 = vmatpush1.msra.mxu0 0.0
    %1116 = vmatprep.subr.mxu0 0.0
    %1117 = vmatpush1.msra.mxu0 0.0
    %1118 = vmatprep.subr.mxu0 0.0
    %1119 = vmatpush1.msra.mxu0 0.0
    %1120 = vmatprep.subr.mxu0 0.0
    %1121 = vmatpush1.msra.mxu0 0.0
    %1122 = vmatprep.subr.mxu0 0.0
    %1123 = vmatpush1.msra.mxu0 0.0
    %1124 = vmatprep.subr.mxu0 0.0
    %1125 = vmatpush1.msra.mxu0 0.0
    %1126 = vmatprep.subr.mxu0 0.0
    %1127 = vmatpush1.msra.mxu0 0.0
    %1128 = vmatprep.subr.mxu0 0.0
    %1129 = vmatpush1.msra.mxu0 0.0
    %1130 = vmatprep.subr.mxu0 0.0
    %1131 = vmatpush1.msra.mxu0 0.0
    %1132 = vmatprep.subr.mxu0 0.0
    %1133 = vmatpush1.msra.mxu0 0.0
    %1134 = vmatprep.subr.mxu0 0.0
    %1135 = vmatpush1.msra.mxu0 0.0
    %1136 = vmatprep.subr.mxu0 0.0
    %1137 = vmatpush1.msra.mxu0 0.0
    %1138 = vmatprep.mubr.f32.mxu0 0.0
    %1139 = vmatmul.mubr.f32.gmra.mrb[0].mxu0 %v1072
    %v1140 = vpop.f32.mrb[0].mxu0
    %v1141 = vadd.f32 0.0, %v1140
    %v1142 = vpop.f32.mrb[0].mxu0
    %1143 = vdwg.mxu0
    %v1145 = vrot.slane %v1141, 2
    %v1147 = vadd.f32 %v213, %v1145
    %v1148 = vxor.u32 %v1147, 2147483648
    %v1149 = vmul.f32 %v1148, 1.442695
    %v1150 = vpow.pop %v1149
    %v1151 = vadd.f32 %v1150, 1.0
    %v1152 = vrcp.pop %v1151
    %v1153 = vmul.f32 1.0, %v1152
    %v1154 = vmul.f32 %v1153, %v110
    %v1155 = vadd.f32 %v1154, %v111
    %v1157 = vrot.slane %v1070, 2
    %1158 = vrot.lane.b32.xlu0 %v1157, 32
    %v1159 = vpop.permute.xlu0 %1158
    %v1161 = vmul.f32 %v1155, %v1159
    %1163 = vrot.lane.b32.xlu0 %v1155, 64
    %v1164 = vpop.permute.xlu0 %1163
    %v1166 = vmul.f32 %v1155, %v1164
    %1168 = vrot.lane.b32.xlu0 %v1166, 32
    %v1169 = vpop.permute.xlu0 %1168
    %v1171 = vadd.f32 %v1161, %v1169
    %v1172 = vtanh.pop %v1171
    %1174 = vrot.lane.b32.xlu0 %v1172, 64
    %v1175 = vpop.permute.xlu0 %1174
    %v1177 = vmul.f32 %v1155, %v1175
    %vm1178 = vcmp.gt.s32.totalorder %v104, 7
    %v1179 = vsel %vm1178, 1, 0
    %1180 = vset.pattern.permute.xlu0 0
    %1181 = vperm.xlu0 %1180, %v1179
    %v1182 = vpop.permute.xlu0 %1181
    %vm1183 = vcmp.eq.s32.totalorder %v1182, 1
    %v1185 = vrot.slane %v1177, 6
    %1186 = vrot.lane.b32.xlu0 %v1185, 32
    %v1187 = vpop.permute.xlu0 %1186
    %v1189 = vsel %vm1183, %v1187, %v1064
    %v1190 = vrot.slane %v443, 6
    %1191 = vrot.lane.b32.xlu0 %v1190, 96
    %v1192 = vpop.permute.xlu0 %1191
    %v1194 = vrot.slane %v571, 4
    %1195 = vrot.lane.b32.xlu0 %v1194, 96
    %v1196 = vpop.permute.xlu0 %1195
    %v1198 = vrot.slane %v696, 2
    %1199 = vrot.lane.b32.xlu0 %v1198, 96
    %v1200 = vpop.permute.xlu0 %1199
    %v1202 = vrot.slane %v936, 6
    %1203 = vrot.lane.b32.xlu0 %v1202, 96
    %v1204 = vpop.permute.xlu0 %1203
    %v1206 = vrot.slane %v1064, 4
    %1207 = vrot.lane.b32.xlu0 %v1206, 96
    %v1208 = vpop.permute.xlu0 %1207
    %v1211 = vrot.slane %v1189, 2
    %1212 = vrot.lane.b32.xlu0 %v1211, 96
    %v1213 = vpop.permute.xlu0 %1212
    %vm1215 = vcmask 1041408
    %v1216 = vsel %vm1215, %v322, %v1192
    %vm1217 = vcmask 1043456
    %v1218 = vsel %vm1217, %v1216, %v1196
    %vm1219 = vcmask 1045504
    %v1220 = vsel %vm1219, %v1218, %v1200
    %v1221 = vsel %vm1215, %v815, %v1204
    %v1222 = vsel %vm1217, %v1221, %v1208
    %v1223 = vsel %vm1219, %v1222, %v1213
    %v1224 = vld [vmem:[#allocation8] sm:$0xff]
    %v1225 = vld [vmem:[#allocation8 + $0x8] sm:$0xff]
    %v1226 = vld [vmem:[#allocation8 + $0x10] sm:$0xff]
    %v1227 = vld [vmem:[#allocation8 + $0x18] sm:$0xff]
    %v1228 = vmul.f32 %v1224, %v110
    %v1229 = vmul.f32 %v1225, %v110
    %v1230 = vmul.f32 %v1226, %v110
    %v1231 = vmul.f32 %v1227, %v110
    %v1232 = vld [vmem:[#allocation10] sm:$0xff]
    %v1233 = vld [vmem:[#allocation10 + $0x8] sm:$0xff]
    %v1234 = vld [vmem:[#allocation10 + $0x10] sm:$0xff]
    %v1235 = vld [vmem:[#allocation10 + $0x18] sm:$0xff]
    %v1236 = vmul.f32 %v1232, %v110
    %v1237 = vmul.f32 %v1233, %v110
    %v1238 = vmul.f32 %v1234, %v110
    %v1239 = vmul.f32 %v1235, %v110
    %v1240 = vld [vmem:[%s7] sm:$0x1]
    %v1241 = vmul.f32 %v1240, %v110
    %v1243 = vlaneseq
    %v1244 = vshrl.u32 %v1243, 7
    %v1245 = vsub.s32 0, %v1244
    %v1246 = vrot.slane %v1241, %v1245
    %1250 = vrot.lane.b32.xlu0 %v1220, 32
    %v1251 = vpop.permute.xlu0 %1250
    %1252 = vrot.lane.b32.xlu0 %v1223, 32
    %v1253 = vpop.permute.xlu0 %1252
    %v1254 = vsel %vm216, %v1251, 0
    %v1256 = vsel %vm216, %v1253, 0
    %1258 = vmatprep.subr.mxu0 0.0
    %1259 = vmatpush1.msra.mxu0 %v1228
    %1260 = vmatprep.subr.mxu0 0.0
    %1261 = vmatpush1.msra.mxu0 %v1229
    %1262 = vmatprep.subr.mxu0 0.0
    %1263 = vmatpush1.msra.mxu0 %v1230
    %1264 = vmatprep.subr.mxu0 0.0
    %1265 = vmatpush1.msra.mxu0 %v1231
    %1266 = vmatprep.subr.mxu0 0.0
    %1267 = vmatpush1.msra.mxu0 0.0
    %1268 = vmatprep.subr.mxu0 0.0
    %1269 = vmatpush1.msra.mxu0 0.0
    %1270 = vmatprep.subr.mxu0 0.0
    %1271 = vmatpush1.msra.mxu0 0.0
    %1272 = vmatprep.subr.mxu0 0.0
    %1273 = vmatpush1.msra.mxu0 0.0
    %1274 = vmatprep.subr.mxu0 0.0
    %1275 = vmatpush1.msra.mxu0 0.0
    %1276 = vmatprep.subr.mxu0 0.0
    %1277 = vmatpush1.msra.mxu0 0.0
    %1278 = vmatprep.subr.mxu0 0.0
    %1279 = vmatpush1.msra.mxu0 0.0
    %1280 = vmatprep.subr.mxu0 0.0
    %1281 = vmatpush1.msra.mxu0 0.0
    %1282 = vmatprep.subr.mxu0 0.0
    %1283 = vmatpush1.msra.mxu0 0.0
    %1284 = vmatprep.subr.mxu0 0.0
    %1285 = vmatpush1.msra.mxu0 0.0
    %1286 = vmatprep.subr.mxu0 0.0
    %1287 = vmatpush1.msra.mxu0 0.0
    %1288 = vmatprep.subr.mxu0 0.0
    %1289 = vmatpush1.msra.mxu0 0.0
    %1290 = vmatprep.subr.mxu0 0.0
    %1291 = vmatpush1.msra.mxu0 0.0
    %1292 = vmatprep.subr.mxu0 0.0
    %1293 = vmatpush1.msra.mxu0 0.0
    %1294 = vmatprep.subr.mxu0 0.0
    %1295 = vmatpush1.msra.mxu0 0.0
    %1296 = vmatprep.subr.mxu0 0.0
    %1297 = vmatpush1.msra.mxu0 0.0
    %1298 = vmatprep.subr.mxu0 0.0
    %1299 = vmatpush1.msra.mxu0 0.0
    %1300 = vmatprep.subr.mxu0 0.0
    %1301 = vmatpush1.msra.mxu0 0.0
    %1302 = vmatprep.subr.mxu0 0.0
    %1303 = vmatpush1.msra.mxu0 0.0
    %1304 = vmatprep.subr.mxu0 0.0
    %1305 = vmatpush1.msra.mxu0 0.0
    %1306 = vmatprep.subr.mxu0 0.0
    %1307 = vmatpush1.msra.mxu0 0.0
    %1308 = vmatprep.subr.mxu0 0.0
    %1309 = vmatpush1.msra.mxu0 0.0
    %1310 = vmatprep.subr.mxu0 0.0
    %1311 = vmatpush1.msra.mxu0 0.0
    %1312 = vmatprep.subr.mxu0 0.0
    %1313 = vmatpush1.msra.mxu0 0.0
    %1314 = vmatprep.subr.mxu0 0.0
    %1315 = vmatpush1.msra.mxu0 0.0
    %1316 = vmatprep.subr.mxu0 0.0
    %1317 = vmatpush1.msra.mxu0 0.0
    %1318 = vmatprep.subr.mxu0 0.0
    %1319 = vmatpush1.msra.mxu0 0.0
    %1320 = vmatprep.subr.mxu0 0.0
    %1321 = vmatpush1.msra.mxu0 0.0
    %1322 = vmatprep.mubr.f32.mxu0 0.0
    %1323 = vmatmul.mubr.f32.gmra.mrb[0].mxu0 %v1254
    %v1324 = vpop.f32.mrb[0].mxu0
    %v1325 = vadd.f32 %v1246, %v1324
    %v1326 = vpop.f32.mrb[0].mxu0
    %1327 = vmatprep.mubr.f32.mxu0 0.0
    %1328 = vmatmul.mubr.f32.gmra.mrb[0].mxu0 %v1256
    %v1329 = vpop.f32.mrb[0].mxu0
    %v1330 = vadd.f32 %v1246, %v1329
    %v1331 = vpop.f32.mrb[0].mxu0
    %1332 = vdwg.mxu0
    %1333 = vmatprep.subr.mxu0 0.0
    %1334 = vmatpush1.msra.mxu0 %v1236
    %1335 = vmatprep.subr.mxu0 0.0
    %1336 = vmatpush1.msra.mxu0 %v1237
    %1337 = vmatprep.subr.mxu0 0.0
    %1338 = vmatpush1.msra.mxu0 %v1238
    %1339 = vmatprep.subr.mxu0 0.0
    %1340 = vmatpush1.msra.mxu0 %v1239
    %1341 = vmatprep.subr.mxu0 0.0
    %1342 = vmatpush1.msra.mxu0 0.0
    %1343 = vmatprep.subr.mxu0 0.0
    %1344 = vmatpush1.msra.mxu0 0.0
    %1345 = vmatprep.subr.mxu0 0.0
    %1346 = vmatpush1.msra.mxu0 0.0
    %1347 = vmatprep.subr.mxu0 0.0
    %1348 = vmatpush1.msra.mxu0 0.0
    %1349 = vmatprep.subr.mxu0 0.0
    %1350 = vmatpush1.msra.mxu0 0.0
    %1351 = vmatprep.subr.mxu0 0.0
    %1352 = vmatpush1.msra.mxu0 0.0
    %1353 = vmatprep.subr.mxu0 0.0
    %1354 = vmatpush1.msra.mxu0 0.0
    %1355 = vmatprep.subr.mxu0 0.0
    %1356 = vmatpush1.msra.mxu0 0.0
    %1357 = vmatprep.subr.mxu0 0.0
    %1358 = vmatpush1.msra.mxu0 0.0
    %1359 = vmatprep.subr.mxu0 0.0
    %1360 = vmatpush1.msra.mxu0 0.0
    %1361 = vmatprep.subr.mxu0 0.0
    %1362 = vmatpush1.msra.mxu0 0.0
    %1363 = vmatprep.subr.mxu0 0.0
    %1364 = vmatpush1.msra.mxu0 0.0
    %1365 = vmatprep.subr.mxu0 0.0
    %1366 = vmatpush1.msra.mxu0 0.0
    %1367 = vmatprep.subr.mxu0 0.0
    %1368 = vmatpush1.msra.mxu0 0.0
    %1369 = vmatprep.subr.mxu0 0.0
    %1370 = vmatpush1.msra.mxu0 0.0
    %1371 = vmatprep.subr.mxu0 0.0
    %1372 = vmatpush1.msra.mxu0 0.0
    %1373 = vmatprep.subr.mxu0 0.0
    %1374 = vmatpush1.msra.mxu0 0.0
    %1375 = vmatprep.subr.mxu0 0.0
    %1376 = vmatpush1.msra.mxu0 0.0
    %1377 = vmatprep.subr.mxu0 0.0
    %1378 = vmatpush1.msra.mxu0 0.0
    %1379 = vmatprep.subr.mxu0 0.0
    %1380 = vmatpush1.msra.mxu0 0.0
    %1381 = vmatprep.subr.mxu0 0.0
    %1382 = vmatpush1.msra.mxu0 0.0
    %1383 = vmatprep.subr.mxu0 0.0
    %1384 = vmatpush1.msra.mxu0 0.0
    %1385 = vmatprep.subr.mxu0 0.0
    %1386 = vmatpush1.msra.mxu0 0.0
    %1387 = vmatprep.subr.mxu0 0.0
    %1388 = vmatpush1.msra.mxu0 0.0
    %1389 = vmatprep.subr.mxu0 0.0
    %1390 = vmatpush1.msra.mxu0 0.0
    %1391 = vmatprep.subr.mxu0 0.0
    %1392 = vmatpush1.msra.mxu0 0.0
    %1393 = vmatprep.subr.mxu0 0.0
    %1394 = vmatpush1.msra.mxu0 0.0
    %1395 = vmatprep.subr.mxu0 0.0
    %1396 = vmatpush1.msra.mxu0 0.0
    %1397 = vmatprep.mubr.f32.mxu0 0.0
    %1398 = vmatmul.mubr.f32.gmra.mrb[0].mxu0 %v218
    %v1399 = vpop.f32.mrb[0].mxu0
    %v1400 = vadd.f32 0.0, %v1399
    %v1401 = vpop.f32.mrb[0].mxu0
    %1402 = vdwg.mxu0
    %v1403 = vadd.f32 %v1325, %v1400
    %v1404 = vxor.u32 %v1403, 2147483648
    %v1405 = vmul.f32 %v1404, 1.442695
    %v1406 = vpow.pop %v1405
    %v1407 = vadd.f32 %v1406, 1.0
    %v1408 = vrcp.pop %v1407
    %v1409 = vmul.f32 1.0, %v1408
    %v1410 = vmul.f32 %v1409, %v110
    %v1411 = vadd.f32 %v1410, %v111
    %v1412 = vmul.f32 %v1411, 0.0
    %1414 = vrot.lane.b32.xlu0 %v1411, 64
    %v1415 = vpop.permute.xlu0 %1414
    %v1417 = vmul.f32 %v1411, %v1415
    %1419 = vrot.lane.b32.xlu0 %v1417, 32
    %v1420 = vpop.permute.xlu0 %1419
    %v1422 = vadd.f32 %v1412, %v1420
    %v1423 = vtanh.pop %v1422
    %1425 = vrot.lane.b32.xlu0 %v1423, 64
    %v1426 = vpop.permute.xlu0 %1425
    %v1428 = vmul.f32 %v1411, %v1426
    %v1429 = vsel %vm321, %v1428, 0.0
    %v1430 = vsel %vm321, %v1422, 0.0
    %1432 = vrot.lane.b32.xlu0 %v1429, 32
    %v1433 = vpop.permute.xlu0 %1432
    %v1434 = vsel %vm216, %v1433, 0
    %1436 = vmatprep.subr.mxu0 0.0
    %1437 = vmatpush1.msra.mxu0 %v1236
    %1438 = vmatprep.subr.mxu0 0.0
    %1439 = vmatpush1.msra.mxu0 %v1237
    %1440 = vmatprep.subr.mxu0 0.0
    %1441 = vmatpush1.msra.mxu0 %v1238
    %1442 = vmatprep.subr.mxu0 0.0
    %1443 = vmatpush1.msra.mxu0 %v1239
    %1444 = vmatprep.subr.mxu0 0.0
    %1445 = vmatpush1.msra.mxu0 0.0
    %1446 = vmatprep.subr.mxu0 0.0
    %1447 = vmatpush1.msra.mxu0 0.0
    %1448 = vmatprep.subr.mxu0 0.0
    %1449 = vmatpush1.msra.mxu0 0.0
    %1450 = vmatprep.subr.mxu0 0.0
    %1451 = vmatpush1.msra.mxu0 0.0
    %1452 = vmatprep.subr.mxu0 0.0
    %1453 = vmatpush1.msra.mxu0 0.0
    %1454 = vmatprep.subr.mxu0 0.0
    %1455 = vmatpush1.msra.mxu0 0.0
    %1456 = vmatprep.subr.mxu0 0.0
    %1457 = vmatpush1.msra.mxu0 0.0
    %1458 = vmatprep.subr.mxu0 0.0
    %1459 = vmatpush1.msra.mxu0 0.0
    %1460 = vmatprep.subr.mxu0 0.0
    %1461 = vmatpush1.msra.mxu0 0.0
    %1462 = vmatprep.subr.mxu0 0.0
    %1463 = vmatpush1.msra.mxu0 0.0
    %1464 = vmatprep.subr.mxu0 0.0
    %1465 = vmatpush1.msra.mxu0 0.0
    %1466 = vmatprep.subr.mxu0 0.0
    %1467 = vmatpush1.msra.mxu0 0.0
    %1468 = vmatprep.subr.mxu0 0.0
    %1469 = vmatpush1.msra.mxu0 0.0
    %1470 = vmatprep.subr.mxu0 0.0
    %1471 = vmatpush1.msra.mxu0 0.0
    %1472 = vmatprep.subr.mxu0 0.0
    %1473 = vmatpush1.msra.mxu0 0.0
    %1474 = vmatprep.subr.mxu0 0.0
    %1475 = vmatpush1.msra.mxu0 0.0
    %1476 = vmatprep.subr.mxu0 0.0
    %1477 = vmatpush1.msra.mxu0 0.0
    %1478 = vmatprep.subr.mxu0 0.0
    %1479 = vmatpush1.msra.mxu0 0.0
    %1480 = vmatprep.subr.mxu0 0.0
    %1481 = vmatpush1.msra.mxu0 0.0
    %1482 = vmatprep.subr.mxu0 0.0
    %1483 = vmatpush1.msra.mxu0 0.0
    %1484 = vmatprep.subr.mxu0 0.0
    %1485 = vmatpush1.msra.mxu0 0.0
    %1486 = vmatprep.subr.mxu0 0.0
    %1487 = vmatpush1.msra.mxu0 0.0
    %1488 = vmatprep.subr.mxu0 0.0
    %1489 = vmatpush1.msra.mxu0 0.0
    %1490 = vmatprep.subr.mxu0 0.0
    %1491 = vmatpush1.msra.mxu0 0.0
    %1492 = vmatprep.subr.mxu0 0.0
    %1493 = vmatpush1.msra.mxu0 0.0
    %1494 = vmatprep.subr.mxu0 0.0
    %1495 = vmatpush1.msra.mxu0 0.0
    %1496 = vmatprep.subr.mxu0 0.0
    %1497 = vmatpush1.msra.mxu0 0.0
    %1498 = vmatprep.subr.mxu0 0.0
    %1499 = vmatpush1.msra.mxu0 0.0
    %1500 = vmatprep.mubr.f32.mxu0 0.0
    %1501 = vmatmul.mubr.f32.gmra.mrb[0].mxu0 %v1434
    %v1502 = vpop.f32.mrb[0].mxu0
    %v1503 = vadd.f32 0.0, %v1502
    %v1504 = vpop.f32.mrb[0].mxu0
    %1505 = vdwg.mxu0
    %v1507 = vrot.slane %v1503, 6
    %v1509 = vadd.f32 %v1325, %v1507
    %v1510 = vxor.u32 %v1509, 2147483648
    %v1511 = vmul.f32 %v1510, 1.442695
    %v1512 = vpow.pop %v1511
    %v1513 = vadd.f32 %v1512, 1.0
    %v1514 = vrcp.pop %v1513
    %v1515 = vmul.f32 1.0, %v1514
    %v1516 = vmul.f32 %v1515, %v110
    %v1517 = vadd.f32 %v1516, %v111
    %v1519 = vrot.slane %v1430, 6
    %v1521 = vmul.f32 %v1517, %v1519
    %1523 = vrot.lane.b32.xlu0 %v1517, 64
    %v1524 = vpop.permute.xlu0 %1523
    %v1526 = vmul.f32 %v1517, %v1524
    %1528 = vrot.lane.b32.xlu0 %v1526, 32
    %v1529 = vpop.permute.xlu0 %1528
    %v1531 = vadd.f32 %v1521, %v1529
    %v1532 = vtanh.pop %v1531
    %1534 = vrot.lane.b32.xlu0 %v1532, 64
    %v1535 = vpop.permute.xlu0 %1534
    %v1537 = vmul.f32 %v1517, %v1535
    %v1539 = vrot.slane %v1537, 2
    %1540 = vrot.lane.b32.xlu0 %v1539, 32
    %v1541 = vpop.permute.xlu0 %1540
    %v1544 = vsel %vm436, %v1541, %v1433
    %v1546 = vrot.slane %v1531, 2
    %1547 = vrot.lane.b32.xlu0 %v1546, 96
    %v1548 = vpop.permute.xlu0 %1547
    %1550 = vrot.lane.b32.xlu0 %v1430, 96
    %v1551 = vpop.permute.xlu0 %1550
    %v1553 = vsel %vm436, %v1548, %v1551
    %v1555 = vsel %vm216, %v1544, 0
    %1557 = vmatprep.subr.mxu0 0.0
    %1558 = vmatpush1.msra.mxu0 %v1236
    %1559 = vmatprep.subr.mxu0 0.0
    %1560 = vmatpush1.msra.mxu0 %v1237
    %1561 = vmatprep.subr.mxu0 0.0
    %1562 = vmatpush1.msra.mxu0 %v1238
    %1563 = vmatprep.subr.mxu0 0.0
    %1564 = vmatpush1.msra.mxu0 %v1239
    %1565 = vmatprep.subr.mxu0 0.0
    %1566 = vmatpush1.msra.mxu0 0.0
    %1567 = vmatprep.subr.mxu0 0.0
    %1568 = vmatpush1.msra.mxu0 0.0
    %1569 = vmatprep.subr.mxu0 0.0
    %1570 = vmatpush1.msra.mxu0 0.0
    %1571 = vmatprep.subr.mxu0 0.0
    %1572 = vmatpush1.msra.mxu0 0.0
    %1573 = vmatprep.subr.mxu0 0.0
    %1574 = vmatpush1.msra.mxu0 0.0
    %1575 = vmatprep.subr.mxu0 0.0
    %1576 = vmatpush1.msra.mxu0 0.0
    %1577 = vmatprep.subr.mxu0 0.0
    %1578 = vmatpush1.msra.mxu0 0.0
    %1579 = vmatprep.subr.mxu0 0.0
    %1580 = vmatpush1.msra.mxu0 0.0
    %1581 = vmatprep.subr.mxu0 0.0
    %1582 = vmatpush1.msra.mxu0 0.0
    %1583 = vmatprep.subr.mxu0 0.0
    %1584 = vmatpush1.msra.mxu0 0.0
    %1585 = vmatprep.subr.mxu0 0.0
    %1586 = vmatpush1.msra.mxu0 0.0
    %1587 = vmatprep.subr.mxu0 0.0
    %1588 = vmatpush1.msra.mxu0 0.0
    %1589 = vmatprep.subr.mxu0 0.0
    %1590 = vmatpush1.msra.mxu0 0.0
    %1591 = vmatprep.subr.mxu0 0.0
    %1592 = vmatpush1.msra.mxu0 0.0
    %1593 = vmatprep.subr.mxu0 0.0
    %1594 = vmatpush1.msra.mxu0 0.0
    %1595 = vmatprep.subr.mxu0 0.0
    %1596 = vmatpush1.msra.mxu0 0.0
    %1597 = vmatprep.subr.mxu0 0.0
    %1598 = vmatpush1.msra.mxu0 0.0
    %1599 = vmatprep.subr.mxu0 0.0
    %1600 = vmatpush1.msra.mxu0 0.0
    %1601 = vmatprep.subr.mxu0 0.0
    %1602 = vmatpush1.msra.mxu0 0.0
    %1603 = vmatprep.subr.mxu0 0.0
    %1604 = vmatpush1.msra.mxu0 0.0
    %1605 = vmatprep.subr.mxu0 0.0
    %1606 = vmatpush1.msra.mxu0 0.0
    %1607 = vmatprep.subr.mxu0 0.0
    %1608 = vmatpush1.msra.mxu0 0.0
    %1609 = vmatprep.subr.mxu0 0.0
    %1610 = vmatpush1.msra.mxu0 0.0
    %1611 = vmatprep.subr.mxu0 0.0
    %1612 = vmatpush1.msra.mxu0 0.0
    %1613 = vmatprep.subr.mxu0 0.0
    %1614 = vmatpush1.msra.mxu0 0.0
    %1615 = vmatprep.subr.mxu0 0.0
    %1616 = vmatpush1.msra.mxu0 0.0
    %1617 = vmatprep.subr.mxu0 0.0
    %1618 = vmatpush1.msra.mxu0 0.0
    %1619 = vmatprep.subr.mxu0 0.0
    %1620 = vmatpush1.msra.mxu0 0.0
    %1621 = vmatprep.mubr.f32.mxu0 0.0
    %1622 = vmatmul.mubr.f32.gmra.mrb[0].mxu0 %v1555
    %v1623 = vpop.f32.mrb[0].mxu0
    %v1624 = vadd.f32 0.0, %v1623
    %v1625 = vpop.f32.mrb[0].mxu0
    %1626 = vdwg.mxu0
    %v1628 = vrot.slane %v1624, 4
    %v1630 = vadd.f32 %v1325, %v1628
    %v1631 = vxor.u32 %v1630, 2147483648
    %v1632 = vmul.f32 %v1631, 1.442695
    %v1633 = vpow.pop %v1632
    %v1634 = vadd.f32 %v1633, 1.0
    %v1635 = vrcp.pop %v1634
    %v1636 = vmul.f32 1.0, %v1635
    %v1637 = vmul.f32 %v1636, %v110
    %v1638 = vadd.f32 %v1637, %v111
    %v1640 = vrot.slane %v1553, 4
    %1641 = vrot.lane.b32.xlu0 %v1640, 32
    %v1642 = vpop.permute.xlu0 %1641
    %v1644 = vmul.f32 %v1638, %v1642
    %1646 = vrot.lane.b32.xlu0 %v1638, 64
    %v1647 = vpop.permute.xlu0 %1646
    %v1649 = vmul.f32 %v1638, %v1647
    %1651 = vrot.lane.b32.xlu0 %v1649, 32
    %v1652 = vpop.permute.xlu0 %1651
    %v1654 = vadd.f32 %v1644, %v1652
    %v1655 = vtanh.pop %v1654
    %1657 = vrot.lane.b32.xlu0 %v1655, 64
    %v1658 = vpop.permute.xlu0 %1657
    %v1660 = vmul.f32 %v1638, %v1658
    %v1662 = vrot.slane %v1660, 4
    %1663 = vrot.lane.b32.xlu0 %v1662, 32
    %v1664 = vpop.permute.xlu0 %1663
    %v1666 = vsel %vm565, %v1664, %v1544
    %v1668 = vrot.slane %v1654, 4
    %1669 = vrot.lane.b32.xlu0 %v1668, 96
    %v1670 = vpop.permute.xlu0 %1669
    %v1672 = vsel %vm565, %v1670, %v1553
    %v1674 = vsel %vm216, %v1666, 0
    %1676 = vmatprep.subr.mxu0 0.0
    %1677 = vmatpush1.msra.mxu0 %v1236
    %1678 = vmatprep.subr.mxu0 0.0
    %1679 = vmatpush1.msra.mxu0 %v1237
    %1680 = vmatprep.subr.mxu0 0.0
    %1681 = vmatpush1.msra.mxu0 %v1238
    %1682 = vmatprep.subr.mxu0 0.0
    %1683 = vmatpush1.msra.mxu0 %v1239
    %1684 = vmatprep.subr.mxu0 0.0
    %1685 = vmatpush1.msra.mxu0 0.0
    %1686 = vmatprep.subr.mxu0 0.0
    %1687 = vmatpush1.msra.mxu0 0.0
    %1688 = vmatprep.subr.mxu0 0.0
    %1689 = vmatpush1.msra.mxu0 0.0
    %1690 = vmatprep.subr.mxu0 0.0
    %1691 = vmatpush1.msra.mxu0 0.0
    %1692 = vmatprep.subr.mxu0 0.0
    %1693 = vmatpush1.msra.mxu0 0.0
    %1694 = vmatprep.subr.mxu0 0.0
    %1695 = vmatpush1.msra.mxu0 0.0
    %1696 = vmatprep.subr.mxu0 0.0
    %1697 = vmatpush1.msra.mxu0 0.0
    %1698 = vmatprep.subr.mxu0 0.0
    %1699 = vmatpush1.msra.mxu0 0.0
    %1700 = vmatprep.subr.mxu0 0.0
    %1701 = vmatpush1.msra.mxu0 0.0
    %1702 = vmatprep.subr.mxu0 0.0
    %1703 = vmatpush1.msra.mxu0 0.0
    %1704 = vmatprep.subr.mxu0 0.0
    %1705 = vmatpush1.msra.mxu0 0.0
    %1706 = vmatprep.subr.mxu0 0.0
    %1707 = vmatpush1.msra.mxu0 0.0
    %1708 = vmatprep.subr.mxu0 0.0
    %1709 = vmatpush1.msra.mxu0 0.0
    %1710 = vmatprep.subr.mxu0 0.0
    %1711 = vmatpush1.msra.mxu0 0.0
    %1712 = vmatprep.subr.mxu0 0.0
    %1713 = vmatpush1.msra.mxu0 0.0
    %1714 = vmatprep.subr.mxu0 0.0
    %1715 = vmatpush1.msra.mxu0 0.0
    %1716 = vmatprep.subr.mxu0 0.0
    %1717 = vmatpush1.msra.mxu0 0.0
    %1718 = vmatprep.subr.mxu0 0.0
    %1719 = vmatpush1.msra.mxu0 0.0
    %1720 = vmatprep.subr.mxu0 0.0
    %1721 = vmatpush1.msra.mxu0 0.0
    %1722 = vmatprep.subr.mxu0 0.0
    %1723 = vmatpush1.msra.mxu0 0.0
    %1724 = vmatprep.subr.mxu0 0.0
    %1725 = vmatpush1.msra.mxu0 0.0
    %1726 = vmatprep.subr.mxu0 0.0
    %1727 = vmatpush1.msra.mxu0 0.0
    %1728 = vmatprep.subr.mxu0 0.0
    %1729 = vmatpush1.msra.mxu0 0.0
    %1730 = vmatprep.subr.mxu0 0.0
    %1731 = vmatpush1.msra.mxu0 0.0
    %1732 = vmatprep.subr.mxu0 0.0
    %1733 = vmatpush1.msra.mxu0 0.0
    %1734 = vmatprep.subr.mxu0 0.0
    %1735 = vmatpush1.msra.mxu0 0.0
    %1736 = vmatprep.subr.mxu0 0.0
    %1737 = vmatpush1.msra.mxu0 0.0
    %1738 = vmatprep.subr.mxu0 0.0
    %1739 = vmatpush1.msra.mxu0 0.0
    %1740 = vmatprep.mubr.f32.mxu0 0.0
    %1741 = vmatmul.mubr.f32.gmra.mrb[0].mxu0 %v1674
    %v1742 = vpop.f32.mrb[0].mxu0
    %v1743 = vadd.f32 0.0, %v1742
    %v1744 = vpop.f32.mrb[0].mxu0
    %1745 = vdwg.mxu0
    %v1747 = vrot.slane %v1743, 2
    %v1749 = vadd.f32 %v1325, %v1747
    %v1750 = vxor.u32 %v1749, 2147483648
    %v1751 = vmul.f32 %v1750, 1.442695
    %v1752 = vpow.pop %v1751
    %v1753 = vadd.f32 %v1752, 1.0
    %v1754 = vrcp.pop %v1753
    %v1755 = vmul.f32 1.0, %v1754
    %v1756 = vmul.f32 %v1755, %v110
    %v1757 = vadd.f32 %v1756, %v111
    %v1759 = vrot.slane %v1672, 2
    %1760 = vrot.lane.b32.xlu0 %v1759, 32
    %v1761 = vpop.permute.xlu0 %1760
    %v1763 = vmul.f32 %v1757, %v1761
    %1765 = vrot.lane.b32.xlu0 %v1757, 64
    %v1766 = vpop.permute.xlu0 %1765
    %v1768 = vmul.f32 %v1757, %v1766
    %1770 = vrot.lane.b32.xlu0 %v1768, 32
    %v1771 = vpop.permute.xlu0 %1770
    %v1773 = vadd.f32 %v1763, %v1771
    %v1774 = vtanh.pop %v1773
    %1776 = vrot.lane.b32.xlu0 %v1774, 64
    %v1777 = vpop.permute.xlu0 %1776
    %v1779 = vmul.f32 %v1757, %v1777
    %v1781 = vrot.slane %v1779, 6
    %1782 = vrot.lane.b32.xlu0 %v1781, 32
    %v1783 = vpop.permute.xlu0 %1782
    %v1785 = vsel %vm690, %v1783, %v1666
    %v1787 = vrot.slane %v1773, 6
    %1788 = vrot.lane.b32.xlu0 %v1787, 96
    %v1789 = vpop.permute.xlu0 %1788
    %v1791 = vsel %vm690, %v1789, %v1672
    %v1793 = vsel %vm216, %v1785, 0
    %1795 = vmatprep.subr.mxu0 0.0
    %1796 = vmatpush1.msra.mxu0 %v1236
    %1797 = vmatprep.subr.mxu0 0.0
    %1798 = vmatpush1.msra.mxu0 %v1237
    %1799 = vmatprep.subr.mxu0 0.0
    %1800 = vmatpush1.msra.mxu0 %v1238
    %1801 = vmatprep.subr.mxu0 0.0
    %1802 = vmatpush1.msra.mxu0 %v1239
    %1803 = vmatprep.subr.mxu0 0.0
    %1804 = vmatpush1.msra.mxu0 0.0
    %1805 = vmatprep.subr.mxu0 0.0
    %1806 = vmatpush1.msra.mxu0 0.0
    %1807 = vmatprep.subr.mxu0 0.0
    %1808 = vmatpush1.msra.mxu0 0.0
    %1809 = vmatprep.subr.mxu0 0.0
    %1810 = vmatpush1.msra.mxu0 0.0
    %1811 = vmatprep.subr.mxu0 0.0
    %1812 = vmatpush1.msra.mxu0 0.0
    %1813 = vmatprep.subr.mxu0 0.0
    %1814 = vmatpush1.msra.mxu0 0.0
    %1815 = vmatprep.subr.mxu0 0.0
    %1816 = vmatpush1.msra.mxu0 0.0
    %1817 = vmatprep.subr.mxu0 0.0
    %1818 = vmatpush1.msra.mxu0 0.0
    %1819 = vmatprep.subr.mxu0 0.0
    %1820 = vmatpush1.msra.mxu0 0.0
    %1821 = vmatprep.subr.mxu0 0.0
    %1822 = vmatpush1.msra.mxu0 0.0
    %1823 = vmatprep.subr.mxu0 0.0
    %1824 = vmatpush1.msra.mxu0 0.0
    %1825 = vmatprep.subr.mxu0 0.0
    %1826 = vmatpush1.msra.mxu0 0.0
    %1827 = vmatprep.subr.mxu0 0.0
    %1828 = vmatpush1.msra.mxu0 0.0
    %1829 = vmatprep.subr.mxu0 0.0
    %1830 = vmatpush1.msra.mxu0 0.0
    %1831 = vmatprep.subr.mxu0 0.0
    %1832 = vmatpush1.msra.mxu0 0.0
    %1833 = vmatprep.subr.mxu0 0.0
    %1834 = vmatpush1.msra.mxu0 0.0
    %1835 = vmatprep.subr.mxu0 0.0
    %1836 = vmatpush1.msra.mxu0 0.0
    %1837 = vmatprep.subr.mxu0 0.0
    %1838 = vmatpush1.msra.mxu0 0.0
    %1839 = vmatprep.subr.mxu0 0.0
    %1840 = vmatpush1.msra.mxu0 0.0
    %1841 = vmatprep.subr.mxu0 0.0
    %1842 = vmatpush1.msra.mxu0 0.0
    %1843 = vmatprep.subr.mxu0 0.0
    %1844 = vmatpush1.msra.mxu0 0.0
    %1845 = vmatprep.subr.mxu0 0.0
    %1846 = vmatpush1.msra.mxu0 0.0
    %1847 = vmatprep.subr.mxu0 0.0
    %1848 = vmatpush1.msra.mxu0 0.0
    %1849 = vmatprep.subr.mxu0 0.0
    %1850 = vmatpush1.msra.mxu0 0.0
    %1851 = vmatprep.subr.mxu0 0.0
    %1852 = vmatpush1.msra.mxu0 0.0
    %1853 = vmatprep.subr.mxu0 0.0
    %1854 = vmatpush1.msra.mxu0 0.0
    %1855 = vmatprep.subr.mxu0 0.0
    %1856 = vmatpush1.msra.mxu0 0.0
    %1857 = vmatprep.subr.mxu0 0.0
    %1858 = vmatpush1.msra.mxu0 0.0
    %1859 = vmatprep.mubr.f32.mxu0 0.0
    %1860 = vmatmul.mubr.f32.gmra.mrb[0].mxu0 %v1793
    %v1861 = vpop.f32.mrb[0].mxu0
    %v1862 = vadd.f32 0.0, %v1861
    %v1863 = vpop.f32.mrb[0].mxu0
    %1864 = vdwg.mxu0
    %v1865 = vadd.f32 %v1330, %v1862
    %v1866 = vxor.u32 %v1865, 2147483648
    %v1867 = vmul.f32 %v1866, 1.442695
    %v1868 = vpow.pop %v1867
    %v1869 = vadd.f32 %v1868, 1.0
    %v1870 = vrcp.pop %v1869
    %v1871 = vmul.f32 1.0, %v1870
    %v1872 = vmul.f32 %v1871, %v110
    %v1873 = vadd.f32 %v1872, %v111
    %1875 = vrot.lane.b32.xlu0 %v1791, 32
    %v1876 = vpop.permute.xlu0 %1875
    %v1878 = vmul.f32 %v1873, %v1876
    %1880 = vrot.lane.b32.xlu0 %v1873, 64
    %v1881 = vpop.permute.xlu0 %1880
    %v1883 = vmul.f32 %v1873, %v1881
    %1885 = vrot.lane.b32.xlu0 %v1883, 32
    %v1886 = vpop.permute.xlu0 %1885
    %v1888 = vadd.f32 %v1878, %v1886
    %v1889 = vtanh.pop %v1888
    %1891 = vrot.lane.b32.xlu0 %v1889, 64
    %v1892 = vpop.permute.xlu0 %1891
    %v1894 = vmul.f32 %v1873, %v1892
    %1895 = vrot.lane.b32.xlu0 %v1785, 96
    %v1896 = vpop.permute.xlu0 %1895
    %v1898 = vsel %vm811, %v1894, %v1896
    %v1899 = vsel %vm811, %v1888, %v1876
    %1901 = vrot.lane.b32.xlu0 %v1898, 32
    %v1902 = vpop.permute.xlu0 %1901
    %v1903 = vsel %vm216, %v1902, 0
    %1905 = vmatprep.subr.mxu0 0.0
    %1906 = vmatpush1.msra.mxu0 %v1236
    %1907 = vmatprep.subr.mxu0 0.0
    %1908 = vmatpush1.msra.mxu0 %v1237
    %1909 = vmatprep.subr.mxu0 0.0
    %1910 = vmatpush1.msra.mxu0 %v1238
    %1911 = vmatprep.subr.mxu0 0.0
    %1912 = vmatpush1.msra.mxu0 %v1239
    %1913 = vmatprep.subr.mxu0 0.0
    %1914 = vmatpush1.msra.mxu0 0.0
    %1915 = vmatprep.subr.mxu0 0.0
    %1916 = vmatpush1.msra.mxu0 0.0
    %1917 = vmatprep.subr.mxu0 0.0
    %1918 = vmatpush1.msra.mxu0 0.0
    %1919 = vmatprep.subr.mxu0 0.0
    %1920 = vmatpush1.msra.mxu0 0.0
    %1921 = vmatprep.subr.mxu0 0.0
    %1922 = vmatpush1.msra.mxu0 0.0
    %1923 = vmatprep.subr.mxu0 0.0
    %1924 = vmatpush1.msra.mxu0 0.0
    %1925 = vmatprep.subr.mxu0 0.0
    %1926 = vmatpush1.msra.mxu0 0.0
    %1927 = vmatprep.subr.mxu0 0.0
    %1928 = vmatpush1.msra.mxu0 0.0
    %1929 = vmatprep.subr.mxu0 0.0
    %1930 = vmatpush1.msra.mxu0 0.0
    %1931 = vmatprep.subr.mxu0 0.0
    %1932 = vmatpush1.msra.mxu0 0.0
    %1933 = vmatprep.subr.mxu0 0.0
    %1934 = vmatpush1.msra.mxu0 0.0
    %1935 = vmatprep.subr.mxu0 0.0
    %1936 = vmatpush1.msra.mxu0 0.0
    %1937 = vmatprep.subr.mxu0 0.0
    %1938 = vmatpush1.msra.mxu0 0.0
    %1939 = vmatprep.subr.mxu0 0.0
    %1940 = vmatpush1.msra.mxu0 0.0
    %1941 = vmatprep.subr.mxu0 0.0
    %1942 = vmatpush1.msra.mxu0 0.0
    %1943 = vmatprep.subr.mxu0 0.0
    %1944 = vmatpush1.msra.mxu0 0.0
    %1945 = vmatprep.subr.mxu0 0.0
    %1946 = vmatpush1.msra.mxu0 0.0
    %1947 = vmatprep.subr.mxu0 0.0
    %1948 = vmatpush1.msra.mxu0 0.0
    %1949 = vmatprep.subr.mxu0 0.0
    %1950 = vmatpush1.msra.mxu0 0.0
    %1951 = vmatprep.subr.mxu0 0.0
    %1952 = vmatpush1.msra.mxu0 0.0
    %1953 = vmatprep.subr.mxu0 0.0
    %1954 = vmatpush1.msra.mxu0 0.0
    %1955 = vmatprep.subr.mxu0 0.0
    %1956 = vmatpush1.msra.mxu0 0.0
    %1957 = vmatprep.subr.mxu0 0.0
    %1958 = vmatpush1.msra.mxu0 0.0
    %1959 = vmatprep.subr.mxu0 0.0
    %1960 = vmatpush1.msra.mxu0 0.0
    %1961 = vmatprep.subr.mxu0 0.0
    %1962 = vmatpush1.msra.mxu0 0.0
    %1963 = vmatprep.subr.mxu0 0.0
    %1964 = vmatpush1.msra.mxu0 0.0
    %1965 = vmatprep.subr.mxu0 0.0
    %1966 = vmatpush1.msra.mxu0 0.0
    %1967 = vmatprep.subr.mxu0 0.0
    %1968 = vmatpush1.msra.mxu0 0.0
    %1969 = vmatprep.mubr.f32.mxu0 0.0
    %1970 = vmatmul.mubr.f32.gmra.mrb[0].mxu0 %v1903
    %v1971 = vpop.f32.mrb[0].mxu0
    %v1972 = vadd.f32 0.0, %v1971
    %v1973 = vpop.f32.mrb[0].mxu0
    %1974 = vdwg.mxu0
    %v1976 = vrot.slane %v1972, 6
    %v1978 = vadd.f32 %v1330, %v1976
    %v1979 = vxor.u32 %v1978, 2147483648
    %v1980 = vmul.f32 %v1979, 1.442695
    %v1981 = vpow.pop %v1980
    %v1982 = vadd.f32 %v1981, 1.0
    %v1983 = vrcp.pop %v1982
    %v1984 = vmul.f32 1.0, %v1983
    %v1985 = vmul.f32 %v1984, %v110
    %v1986 = vadd.f32 %v1985, %v111
    %v1988 = vrot.slane %v1899, 6
    %v1990 = vmul.f32 %v1986, %v1988
    %1992 = vrot.lane.b32.xlu0 %v1986, 64
    %v1993 = vpop.permute.xlu0 %1992
    %v1995 = vmul.f32 %v1986, %v1993
    %1997 = vrot.lane.b32.xlu0 %v1995, 32
    %v1998 = vpop.permute.xlu0 %1997
    %v2000 = vadd.f32 %v1990, %v1998
    %v2001 = vtanh.pop %v2000
    %2003 = vrot.lane.b32.xlu0 %v2001, 64
    %v2004 = vpop.permute.xlu0 %2003
    %v2006 = vmul.f32 %v1986, %v2004
    %v2008 = vrot.slane %v2006, 2
    %2009 = vrot.lane.b32.xlu0 %v2008, 32
    %v2010 = vpop.permute.xlu0 %2009
    %v2013 = vsel %vm929, %v2010, %v1902
    %v2015 = vrot.slane %v2000, 2
    %2016 = vrot.lane.b32.xlu0 %v2015, 96
    %v2017 = vpop.permute.xlu0 %2016
    %2019 = vrot.lane.b32.xlu0 %v1899, 96
    %v2020 = vpop.permute.xlu0 %2019
    %v2022 = vsel %vm929, %v2017, %v2020
    %v2024 = vsel %vm216, %v2013, 0
    %2026 = vmatprep.subr.mxu0 0.0
    %2027 = vmatpush1.msra.mxu0 %v1236
    %2028 = vmatprep.subr.mxu0 0.0
    %2029 = vmatpush1.msra.mxu0 %v1237
    %2030 = vmatprep.subr.mxu0 0.0
    %2031 = vmatpush1.msra.mxu0 %v1238
    %2032 = vmatprep.subr.mxu0 0.0
    %2033 = vmatpush1.msra.mxu0 %v1239
    %2034 = vmatprep.subr.mxu0 0.0
    %2035 = vmatpush1.msra.mxu0 0.0
    %2036 = vmatprep.subr.mxu0 0.0
    %2037 = vmatpush1.msra.mxu0 0.0
    %2038 = vmatprep.subr.mxu0 0.0
    %2039 = vmatpush1.msra.mxu0 0.0
    %2040 = vmatprep.subr.mxu0 0.0
    %2041 = vmatpush1.msra.mxu0 0.0
    %2042 = vmatprep.subr.mxu0 0.0
    %2043 = vmatpush1.msra.mxu0 0.0
    %2044 = vmatprep.subr.mxu0 0.0
    %2045 = vmatpush1.msra.mxu0 0.0
    %2046 = vmatprep.subr.mxu0 0.0
    %2047 = vmatpush1.msra.mxu0 0.0
    %2048 = vmatprep.subr.mxu0 0.0
    %2049 = vmatpush1.msra.mxu0 0.0
    %2050 = vmatprep.subr.mxu0 0.0
    %2051 = vmatpush1.msra.mxu0 0.0
    %2052 = vmatprep.subr.mxu0 0.0
    %2053 = vmatpush1.msra.mxu0 0.0
    %2054 = vmatprep.subr.mxu0 0.0
    %2055 = vmatpush1.msra.mxu0 0.0
    %2056 = vmatprep.subr.mxu0 0.0
    %2057 = vmatpush1.msra.mxu0 0.0
    %2058 = vmatprep.subr.mxu0 0.0
    %2059 = vmatpush1.msra.mxu0 0.0
    %2060 = vmatprep.subr.mxu0 0.0
    %2061 = vmatpush1.msra.mxu0 0.0
    %2062 = vmatprep.subr.mxu0 0.0
    %2063 = vmatpush1.msra.mxu0 0.0
    %2064 = vmatprep.subr.mxu0 0.0
    %2065 = vmatpush1.msra.mxu0 0.0
    %2066 = vmatprep.subr.mxu0 0.0
    %2067 = vmatpush1.msra.mxu0 0.0
    %2068 = vmatprep.subr.mxu0 0.0
    %2069 = vmatpush1.msra.mxu0 0.0
    %2070 = vmatprep.subr.mxu0 0.0
    %2071 = vmatpush1.msra.mxu0 0.0
    %2072 = vmatprep.subr.mxu0 0.0
    %2073 = vmatpush1.msra.mxu0 0.0
    %2074 = vmatprep.subr.mxu0 0.0
    %2075 = vmatpush1.msra.mxu0 0.0
    %2076 = vmatprep.subr.mxu0 0.0
    %2077 = vmatpush1.msra.mxu0 0.0
    %2078 = vmatprep.subr.mxu0 0.0
    %2079 = vmatpush1.msra.mxu0 0.0
    %2080 = vmatprep.subr.mxu0 0.0
    %2081 = vmatpush1.msra.mxu0 0.0
    %2082 = vmatprep.subr.mxu0 0.0
    %2083 = vmatpush1.msra.mxu0 0.0
    %2084 = vmatprep.subr.mxu0 0.0
    %2085 = vmatpush1.msra.mxu0 0.0
    %2086 = vmatprep.subr.mxu0 0.0
    %2087 = vmatpush1.msra.mxu0 0.0
    %2088 = vmatprep.subr.mxu0 0.0
    %2089 = vmatpush1.msra.mxu0 0.0
    %2090 = vmatprep.mubr.f32.mxu0 0.0
    %2091 = vmatmul.mubr.f32.gmra.mrb[0].mxu0 %v2024
    %v2092 = vpop.f32.mrb[0].mxu0
    %v2093 = vadd.f32 0.0, %v2092
    %v2094 = vpop.f32.mrb[0].mxu0
    %2095 = vdwg.mxu0
    %v2097 = vrot.slane %v2093, 4
    %v2099 = vadd.f32 %v1330, %v2097
    %v2100 = vxor.u32 %v2099, 2147483648
    %v2101 = vmul.f32 %v2100, 1.442695
    %v2102 = vpow.pop %v2101
    %v2103 = vadd.f32 %v2102, 1.0
    %v2104 = vrcp.pop %v2103
    %v2105 = vmul.f32 1.0, %v2104
    %v2106 = vmul.f32 %v2105, %v110
    %v2107 = vadd.f32 %v2106, %v111
    %v2109 = vrot.slane %v2022, 4
    %2110 = vrot.lane.b32.xlu0 %v2109, 32
    %v2111 = vpop.permute.xlu0 %2110
    %v2113 = vmul.f32 %v2107, %v2111
    %2115 = vrot.lane.b32.xlu0 %v2107, 64
    %v2116 = vpop.permute.xlu0 %2115
    %v2118 = vmul.f32 %v2107, %v2116
    %2120 = vrot.lane.b32.xlu0 %v2118, 32
    %v2121 = vpop.permute.xlu0 %2120
    %v2123 = vadd.f32 %v2113, %v2121
    %v2124 = vtanh.pop %v2123
    %2126 = vrot.lane.b32.xlu0 %v2124, 64
    %v2127 = vpop.permute.xlu0 %2126
    %v2129 = vmul.f32 %v2107, %v2127
    %v2131 = vrot.slane %v2129, 4
    %2132 = vrot.lane.b32.xlu0 %v2131, 32
    %v2133 = vpop.permute.xlu0 %2132
    %v2135 = vsel %vm1058, %v2133, %v2013
    %v2137 = vrot.slane %v2123, 4
    %2138 = vrot.lane.b32.xlu0 %v2137, 96
    %v2139 = vpop.permute.xlu0 %2138
    %v2141 = vsel %vm1058, %v2139, %v2022
    %v2143 = vsel %vm216, %v2135, 0
    %2145 = vmatprep.subr.mxu0 0.0
    %2146 = vmatpush1.msra.mxu0 %v1236
    %2147 = vmatprep.subr.mxu0 0.0
    %2148 = vmatpush1.msra.mxu0 %v1237
    %2149 = vmatprep.subr.mxu0 0.0
    %2150 = vmatpush1.msra.mxu0 %v1238
    %2151 = vmatprep.subr.mxu0 0.0
    %2152 = vmatpush1.msra.mxu0 %v1239
    %2153 = vmatprep.subr.mxu0 0.0
    %2154 = vmatpush1.msra.mxu0 0.0
    %2155 = vmatprep.subr.mxu0 0.0
    %2156 = vmatpush1.msra.mxu0 0.0
    %2157 = vmatprep.subr.mxu0 0.0
    %2158 = vmatpush1.msra.mxu0 0.0
    %2159 = vmatprep.subr.mxu0 0.0
    %2160 = vmatpush1.msra.mxu0 0.0
    %2161 = vmatprep.subr.mxu0 0.0
    %2162 = vmatpush1.msra.mxu0 0.0
    %2163 = vmatprep.subr.mxu0 0.0
    %2164 = vmatpush1.msra.mxu0 0.0
    %2165 = vmatprep.subr.mxu0 0.0
    %2166 = vmatpush1.msra.mxu0 0.0
    %2167 = vmatprep.subr.mxu0 0.0
    %2168 = vmatpush1.msra.mxu0 0.0
    %2169 = vmatprep.subr.mxu0 0.0
    %2170 = vmatpush1.msra.mxu0 0.0
    %2171 = vmatprep.subr.mxu0 0.0
    %2172 = vmatpush1.msra.mxu0 0.0
    %2173 = vmatprep.subr.mxu0 0.0
    %2174 = vmatpush1.msra.mxu0 0.0
    %2175 = vmatprep.subr.mxu0 0.0
    %2176 = vmatpush1.msra.mxu0 0.0
    %2177 = vmatprep.subr.mxu0 0.0
    %2178 = vmatpush1.msra.mxu0 0.0
    %2179 = vmatprep.subr.mxu0 0.0
    %2180 = vmatpush1.msra.mxu0 0.0
    %2181 = vmatprep.subr.mxu0 0.0
    %2182 = vmatpush1.msra.mxu0 0.0
    %2183 = vmatprep.subr.mxu0 0.0
    %2184 = vmatpush1.msra.mxu0 0.0
    %2185 = vmatprep.subr.mxu0 0.0
    %2186 = vmatpush1.msra.mxu0 0.0
    %2187 = vmatprep.subr.mxu0 0.0
    %2188 = vmatpush1.msra.mxu0 0.0
    %2189 = vmatprep.subr.mxu0 0.0
    %2190 = vmatpush1.msra.mxu0 0.0
    %2191 = vmatprep.subr.mxu0 0.0
    %2192 = vmatpush1.msra.mxu0 0.0
    %2193 = vmatprep.subr.mxu0 0.0
    %2194 = vmatpush1.msra.mxu0 0.0
    %2195 = vmatprep.subr.mxu0 0.0
    %2196 = vmatpush1.msra.mxu0 0.0
    %2197 = vmatprep.subr.mxu0 0.0
    %2198 = vmatpush1.msra.mxu0 0.0
    %2199 = vmatprep.subr.mxu0 0.0
    %2200 = vmatpush1.msra.mxu0 0.0
    %2201 = vmatprep.subr.mxu0 0.0
    %2202 = vmatpush1.msra.mxu0 0.0
    %2203 = vmatprep.subr.mxu0 0.0
    %2204 = vmatpush1.msra.mxu0 0.0
    %2205 = vmatprep.subr.mxu0 0.0
    %2206 = vmatpush1.msra.mxu0 0.0
    %2207 = vmatprep.subr.mxu0 0.0
    %2208 = vmatpush1.msra.mxu0 0.0
    %2209 = vmatprep.mubr.f32.mxu0 0.0
    %2210 = vmatmul.mubr.f32.gmra.mrb[0].mxu0 %v2143
    %v2211 = vpop.f32.mrb[0].mxu0
    %v2212 = vadd.f32 0.0, %v2211
    %v2213 = vpop.f32.mrb[0].mxu0
    %2214 = vdwg.mxu0
    %v2216 = vrot.slane %v2212, 2
    %v2218 = vadd.f32 %v1330, %v2216
    %v2219 = vxor.u32 %v2218, 2147483648
    %v2220 = vmul.f32 %v2219, 1.442695
    %v2221 = vpow.pop %v2220
    %v2222 = vadd.f32 %v2221, 1.0
    %v2223 = vrcp.pop %v2222
    %v2224 = vmul.f32 1.0, %v2223
    %v2225 = vmul.f32 %v2224, %v110
    %v2226 = vadd.f32 %v2225, %v111
    %v2228 = vrot.slane %v2141, 2
    %2229 = vrot.lane.b32.xlu0 %v2228, 32
    %v2230 = vpop.permute.xlu0 %2229
    %v2232 = vmul.f32 %v2226, %v2230
    %2234 = vrot.lane.b32.xlu0 %v2226, 64
    %v2235 = vpop.permute.xlu0 %2234
    %v2237 = vmul.f32 %v2226, %v2235
    %2239 = vrot.lane.b32.xlu0 %v2237, 32
    %v2240 = vpop.permute.xlu0 %2239
    %v2242 = vadd.f32 %v2232, %v2240
    %v2243 = vtanh.pop %v2242
    %2245 = vrot.lane.b32.xlu0 %v2243, 64
    %v2246 = vpop.permute.xlu0 %2245
    %v2248 = vmul.f32 %v2226, %v2246
    %v2250 = vrot.slane %v2248, 6
    %2251 = vrot.lane.b32.xlu0 %v2250, 32
    %v2252 = vpop.permute.xlu0 %2251
    %v2254 = vsel %vm1183, %v2252, %v2135
    %v2256 = vrot.slane %v2254, 6
    %v2258 = vsel %vm1215, %v1189, %v2256
    %v2259 = vld [vmem:[%s8] sm:$0xff]
    %v2260 = vld [vmem:[%s8 + $0x8] sm:$0xff]
    %v2261 = vld [vmem:[%s8 + $0x10] sm:$0xff]
    %v2262 = vld [vmem:[%s8 + $0x18] sm:$0xff]
    %v2263 = vld [vmem:[%s9] sm:$0x1]
    %v2265 = vlaneseq
    %v2266 = vshrl.u32 %v2265, 7
    %v2267 = vsub.s32 0, %v2266
    %v2268 = vrot.slane %v2263, %v2267
    %v2271 = vsel %vm216, %v2258, 0
    %2273 = vmatprep.subr.mxu0 0.0
    %2274 = vmatpush1.msra.mxu0 %v2259
    %2275 = vmatprep.subr.mxu0 0.0
    %2276 = vmatpush1.msra.mxu0 %v2260
    %2277 = vmatprep.subr.mxu0 0.0
    %2278 = vmatpush1.msra.mxu0 %v2261
    %2279 = vmatprep.subr.mxu0 0.0
    %2280 = vmatpush1.msra.mxu0 %v2262
    %2281 = vmatprep.subr.mxu0 0.0
    %2282 = vmatpush1.msra.mxu0 0.0
    %2283 = vmatprep.subr.mxu0 0.0
    %2284 = vmatpush1.msra.mxu0 0.0
    %2285 = vmatprep.subr.mxu0 0.0
    %2286 = vmatpush1.msra.mxu0 0.0
    %2287 = vmatprep.subr.mxu0 0.0
    %2288 = vmatpush1.msra.mxu0 0.0
    %2289 = vmatprep.subr.mxu0 0.0
    %2290 = vmatpush1.msra.mxu0 0.0
    %2291 = vmatprep.subr.mxu0 0.0
    %2292 = vmatpush1.msra.mxu0 0.0
    %2293 = vmatprep.subr.mxu0 0.0
    %2294 = vmatpush1.msra.mxu0 0.0
    %2295 = vmatprep.subr.mxu0 0.0
    %2296 = vmatpush1.msra.mxu0 0.0
    %2297 = vmatprep.subr.mxu0 0.0
    %2298 = vmatpush1.msra.mxu0 0.0
    %2299 = vmatprep.subr.mxu0 0.0
    %2300 = vmatpush1.msra.mxu0 0.0
    %2301 = vmatprep.subr.mxu0 0.0
    %2302 = vmatpush1.msra.mxu0 0.0
    %2303 = vmatprep.subr.mxu0 0.0
    %2304 = vmatpush1.msra.mxu0 0.0
    %2305 = vmatprep.subr.mxu0 0.0
    %2306 = vmatpush1.msra.mxu0 0.0
    %2307 = vmatprep.subr.mxu0 0.0
    %2308 = vmatpush1.msra.mxu0 0.0
    %2309 = vmatprep.subr.mxu0 0.0
    %2310 = vmatpush1.msra.mxu0 0.0
    %2311 = vmatprep.subr.mxu0 0.0
    %2312 = vmatpush1.msra.mxu0 0.0
    %2313 = vmatprep.subr.mxu0 0.0
    %2314 = vmatpush1.msra.mxu0 0.0
    %2315 = vmatprep.subr.mxu0 0.0
    %2316 = vmatpush1.msra.mxu0 0.0
    %2317 = vmatprep.subr.mxu0 0.0
    %2318 = vmatpush1.msra.mxu0 0.0
    %2319 = vmatprep.subr.mxu0 0.0
    %2320 = vmatpush1.msra.mxu0 0.0
    %2321 = vmatprep.subr.mxu0 0.0
    %2322 = vmatpush1.msra.mxu0 0.0
    %2323 = vmatprep.subr.mxu0 0.0
    %2324 = vmatpush1.msra.mxu0 0.0
    %2325 = vmatprep.subr.mxu0 0.0
    %2326 = vmatpush1.msra.mxu0 0.0
    %2327 = vmatprep.subr.mxu0 0.0
    %2328 = vmatpush1.msra.mxu0 0.0
    %2329 = vmatprep.subr.mxu0 0.0
    %2330 = vmatpush1.msra.mxu0 0.0
    %2331 = vmatprep.subr.mxu0 0.0
    %2332 = vmatpush1.msra.mxu0 0.0
    %2333 = vmatprep.subr.mxu0 0.0
    %2334 = vmatpush1.msra.mxu0 0.0
    %2335 = vmatprep.subr.mxu0 0.0
    %2336 = vmatpush1.msra.mxu0 0.0
    %2337 = vmatprep.mubr.f32.mxu0 0.0
    %2338 = vmatmul.mubr.f32.gmra.mrb[0].mxu0 %v2271
    %v2339 = vpop.f32.mrb[0].mxu0
    %v2340 = vadd.f32 %v2268, %v2339
    %v2341 = vpop.f32.mrb[0].mxu0
    %2342 = vdwg.mxu0
    %2343 = vst [vmem:[#allocation11] sm:$0xf] %v2340
    // Predicated region
    $region62: #{tpu_custom_call.1} parent=1 // pred_check
      _
    $region63: #{tpu_custom_call.1} parent=1 // pred_check_branch
      %2345 = sbr.rel (0) target = $region65
    $region64: #{tpu_custom_call.1} parent=1 // pred_region
      %s2347 = ssub.s32 64, 64
      %2348 = vsyncadd [#allocation4], %s2347
      %s2350 = sshll.u32 [#allocation11], 4
      %s2351 = int_to_ptr.vmem [resolvable:$true] %s2350
      %2353 = dma.vmem_to_hbm [thread:$0]  %s2351, 64, %s10, [#allocation4]
    $region65: #{tpu_custom_call.1} parent=1 // pred_fallthru
      _
    // Predicated region
    $region66: #{tpu_custom_call.1} parent=1 // pred_check
      _
    $region67: #{tpu_custom_call.1} parent=1 // pred_check_branch
      %2355 = sbr.rel (0) target = $region69
    $region68: #{tpu_custom_call.1} parent=1 // pred_region
      %2356 = dma.done [#allocation4], 64
    $region69: #{tpu_custom_call.1} parent=1 // pred_fallthru
      _
    %2357 = vsyncpa [#allocation3], 1
    %2358 = vsyncpa [#allocation6], 1
    %2359 = vsyncpa [#allocation9], 1
    %2360 = vsyncpa [#allocation4], 1

</llo_original>
